<compile_context>
chip_gen: v5e
topology: v5e:2x2
jax: 0.10.0
libtpu: 0.0.40
codegen_flags: <defaults>
</compile_context>

<pallas_src>
import functools

import jax
import jax.numpy as jnp
import numpy as np
from jax.experimental import pallas as pl
from jax.experimental.pallas import tpu as pltpu


def _leaky(v):
    return jnp.where(v >= 0, v, 0.2 * v)


def _res_stack_kernel(x_ref, halo_ref, w3_ref, b3_ref, ws_ref, w1_ref, bsc_ref,
                      o_ref, *, d):
    # Per grid step (batch / tile dims squeezed):
    #   x_ref    : (C, TT)   input tile (channels on sublanes, time on lanes)
    #   halo_ref : (C, HW)   lanes [0,d) = d cols left of tile, lanes [d,2d) =
    #                        d cols right of tile (reflection at sequence edges)
    #   w3_ref   : (3, C, C) dilated k=3 conv taps, w3_ref[k] = (Cout, Cin)
    #   b3_ref   : (C, 1)    f32 bias of the k=3 conv
    #   ws_ref   : (C, C)    shortcut 1x1 weight
    #   w1_ref   : (C, C)    block second 1x1 weight
    #   bsc_ref  : (C, 1)    f32 fused bias (bs + b1)
    #   o_ref    : (C, TT)
    xt = x_ref[...]
    tt = xt.shape[-1]
    halo = halo_ref[...]

    h = _leaky(xt)                     # centre tap
    hf = _leaky(halo[:, :d])           # d columns just left of the tile
    hb = _leaky(halo[:, d:2 * d])      # d columns just right of the tile

    # d-shifted tap views: the intrinsic per-tap shift of a dilated conv.  They
    # feed the MXU directly -- no (3C, TT) stacking copy.
    tap0 = jnp.concatenate([hf, h[:, :tt - d]], axis=1)   # h shifted right by d
    tap2 = jnp.concatenate([h[:, d:], hb], axis=1)        # h shifted left  by d

    # Dilated k=3 conv: three separate MXU dots, f32 accumulation.
    y3 = jnp.dot(w3_ref[0], tap0, preferred_element_type=jnp.float32)
    y3 = y3 + jnp.dot(w3_ref[1], h, preferred_element_type=jnp.float32)
    y3 = y3 + jnp.dot(w3_ref[2], tap2, preferred_element_type=jnp.float32)
    y3 = y3 + b3_ref[...]

    # Second LeakyReLU in the compute dtype (packed bf16 on v6e/v7x VALUs).
    h2 = _leaky(y3.astype(xt.dtype))

    # shortcut 1x1 (on x) + block 1x1 (on h2): two dots, f32 acc, fused bias.
    out = jnp.dot(ws_ref[...], xt, preferred_element_type=jnp.float32)
    out = out + jnp.dot(w1_ref[...], h2, preferred_element_type=jnp.float32)
    out = out + bsc_ref[...]
    o_ref[...] = out.astype(o_ref.dtype)


def _vmem_capacity_bytes():
    """Physical VMEM of the attached TPU (v5e/v6e: 128 MiB, v7x: 64 MiB)."""
    try:
        return int(pltpu.get_tpu_info().vmem_capacity_bytes)
    except Exception:
        return 64 * 1024 * 1024            # conservative (v7x-sized) fallback


def _const_spec(shape, buffers):
    """BlockSpec for a grid-invariant operand (same block every grid step)."""
    index_map = lambda b, t: (0,) * len(shape)
    if buffers == 1:
        try:
            return pl.BlockSpec(shape, index_map, pipeline_mode=pl.Buffered(1))
        except Exception:                  # pipeline_mode/Buffered unsupported
            pass
    return pl.BlockSpec(shape, index_map)


def _choose_time_tile(T, C, d, itemsize, vmem_capacity, tt_max):
    """Pick the time tile TT (multiple of 128 when multi-tile) and padded Tp."""
    budget = vmem_capacity // 2            # headroom for compiler scratch
    # bytes per time column: double-buffered in/out tiles + in-kernel
    # intermediates (h, tap0, tap2 in compute dtype; y3/out in f32).
    col_bytes = C * (9 * itemsize + 8) + 1
    tt_cap = (budget // col_bytes) // 128 * 128
    tt_cap = max(128, min(int(tt_max), int(tt_cap)))

    if T <= tt_cap:
        if T <= 128 or T % 128 == 0:
            return T, T                    # single tile, no padding needed
        Tp = -(-T // 128) * 128            # lane-pad to a 128 multiple
        if Tp - T < d:
            Tp += 128                      # need >= d reflected cols in the pad
        return Tp, Tp

    TT = tt_cap
    while TT <= d:                         # halo handling needs TT > d
        TT += 128
    Tp = -(-T // TT) * TT
    if Tp > T and Tp - T < d:
        Tp += TT
    return TT, Tp


def res_stack_forward(x_bct, w3, b3, w1, b1, ws, bs, *, dilation,
                      compute_dtype=jnp.bfloat16, tt_max=1024):
    """ResStack forward.

    x_bct : (B, C, T)  float input, PyTorch NCL layout
    w3    : (C, C, 3)  effective (weight-normalized) dilated conv weight
    w1,ws : (C, C, 1)  effective 1x1 conv weights (block second conv / shortcut)
    b3,b1,bs : (C,)    biases
    Returns (B, C, T) in `compute_dtype`.
    """
    B, C, T = x_bct.shape
    d = int(dilation)
    assert 1 <= d <= T - 1, "reflection pad requires 1 <= dilation <= T-1"

    cdt = compute_dtype
    itemsize = np.dtype(cdt).itemsize
    vmem_cap = _vmem_capacity_bytes()
    TT, Tp = _choose_time_tile(T, C, d, itemsize, vmem_cap, tt_max)
    NT = Tp // TT
    assert NT * TT == Tp and TT > d

    x = x_bct.astype(cdt)
    if Tp > T:
        # Reflection-correct right padding: outputs in [0, T) only read input
        # positions < T + d, so the first d padded columns must carry the true
        # right reflection; everything past that is don't-care (discarded).
        refl = x[:, :, T - d - 1:T - 1][:, :, ::-1]
        pieces = [x, refl]
        if Tp - T > d:
            pieces.append(jnp.zeros((B, C, Tp - T - d), cdt))
        x = jnp.concatenate(pieces, axis=-1)           # (B, C, Tp)

    # Per-tile halo (B, NT, C, HW): the d reflect-extended columns just left of
    # each tile and the d just right of it, padded to a full 128-lane slab so
    # the per-step halo transfer is a single unmasked DMA.
    HW = max(128, -(-2 * d // 128) * 128)
    left0 = x[:, :, 1:d + 1][:, :, ::-1]               # left reflection of sequence
    rightN = x[:, :, Tp - d - 1:Tp - 1][:, :, ::-1]    # right reflection of sequence
    xr = x.reshape(B, C, NT, TT)
    fronts = jnp.concatenate([left0[:, :, None, :], xr[:, :, :-1, TT - d:]], axis=2)
    backs = jnp.concatenate([xr[:, :, 1:, :d], rightN[:, :, None, :]], axis=2)
    halo = jnp.concatenate([fronts, backs], axis=-1)   # (B, C, NT, 2d)
    halo = jnp.pad(halo, ((0, 0), (0, 0), (0, 0), (0, HW - 2 * d)))
    halo = jnp.transpose(halo, (0, 2, 1, 3))           # (B, NT, C, HW)

    # Grid-invariant weight layouts.  jnp.dot(W(Cout, Cin), h(Cin, TT)) is the
    # MXU-native (M,K)x(K,N) form, so no per-step weight transpose is needed.
    w3s = jnp.transpose(w3, (2, 0, 1)).astype(cdt)     # (3, C, C), w3s[k]=(Cout,Cin)
    ws2 = ws[:, :, 0].astype(cdt)                      # (C, C) shortcut 1x1
    w12 = w1[:, :, 0].astype(cdt)                      # (C, C) block second 1x1
    b3c = b3.reshape(C, 1).astype(jnp.float32)
    bsc = (bs + b1).reshape(C, 1).astype(jnp.float32)

    kernel = functools.partial(_res_stack_kernel, d=d)
    vmem_limit = int(min(max(vmem_cap * 3 // 4, 32 * 1024 * 1024), vmem_cap))

    def _call(weight_buffers):
        return pl.pallas_call(
            kernel,
            out_shape=jax.ShapeDtypeStruct((B, C, Tp), cdt),
            grid_spec=pltpu.PrefetchScalarGridSpec(
                num_scalar_prefetch=0,
                grid=(B, NT),
                in_specs=[
                    pl.BlockSpec((None, C, TT), lambda b, t: (b, 0, t)),          # x tile
                    pl.BlockSpec((None, None, C, HW), lambda b, t: (b, t, 0, 0)),  # halo
                    _const_spec((3, C, C), weight_buffers),                       # w3 taps
                    _const_spec((C, 1), weight_buffers),                          # b3
                    _const_spec((C, C), weight_buffers),                          # ws
                    _const_spec((C, C), weight_buffers),                          # w1
                    _const_spec((C, 1), weight_buffers),                          # bs + b1
                ],
                out_specs=pl.BlockSpec((None, C, TT), lambda b, t: (b, 0, t)),
            ),
            compiler_params=pltpu.CompilerParams(
                dimension_semantics=("parallel", "parallel"),
                vmem_limit_bytes=vmem_limit),
        )(x, halo, w3s, b3c, ws2, w12, bsc)

    try:
        out = _call(1)        # single-buffer the grid-invariant operands
    except Exception:         # Buffered(1) not supported by this Pallas build
        out = _call(2)

    return out[:, :, :T] if Tp > T else out


def _weight_norm(v, g):
    # PyTorch weight_norm for Conv1d: norm over all dims except dim 0 (out channels)
    norm = jnp.sqrt(jnp.sum(v * v, axis=(1, 2), keepdims=True))
    return g * v / norm


def _reference(x_bct, w3, b3, w1, b1, ws, bs, dilation):
    """Pure-JAX f32 reference in PyTorch NCL layout. x_bct: (B, C, T)."""
    d = dilation
    B, C, T = x_bct.shape
    sc = jnp.einsum("oc,bct->bot", ws[:, :, 0], x_bct) + bs[None, :, None]
    h = _leaky(x_bct)
    hp = jnp.pad(h, ((0, 0), (0, 0), (d, d)), mode="reflect")
    y3 = jnp.zeros((B, C, T), jnp.float32)
    for k in range(3):
        y3 = y3 + jnp.einsum("oc,bct->bot", w3[:, :, k], hp[:, :, k * d:k * d + T])
    y3 = y3 + b3[None, :, None]
    blk = jnp.einsum("oc,bct->bot", w1[:, :, 0], _leaky(y3)) + b1[None, :, None]
    return sc + blk


def _run_case(B, C, T, dilation, compute_dtype, tt_max, rtol, atol, key):
    ks = jax.random.split(key, 10)
    v3 = jax.random.normal(ks[0], (C, C, 3), jnp.float32) * 0.3
    g3 = jax.random.normal(ks[1], (C, 1, 1), jnp.float32) * 0.5 + 1.0
    b3 = jax.random.normal(ks[2], (C,), jnp.float32) * 0.1
    v1 = jax.random.normal(ks[3], (C, C, 1), jnp.float32) * 0.3
    g1 = jax.random.normal(ks[4], (C, 1, 1), jnp.float32) * 0.5 + 1.0
    b1 = jax.random.normal(ks[5], (C,), jnp.float32) * 0.1
    vs = jax.random.normal(ks[6], (C, C, 1), jnp.float32) * 0.3
    gs = jax.random.normal(ks[7], (C, 1, 1), jnp.float32) * 0.5 + 1.0
    bs = jax.random.normal(ks[8], (C,), jnp.float32) * 0.1
    x = jax.random.normal(ks[9], (B, C, T), jnp.float32)

    w3 = _weight_norm(v3, g3)
    w1 = _weight_norm(v1, g1)
    ws = _weight_norm(vs, gs)

    out = res_stack_forward(x, w3, b3, w1, b1, ws, bs, dilation=dilation,
                            compute_dtype=compute_dtype, tt_max=tt_max)
    out = jax.block_until_ready(out)

    ref = _reference(x, w3, b3, w1, b1, ws, bs, dilation)
    np.testing.assert_allclose(np.asarray(out.astype(jnp.float32)),
                               np.asarray(ref), rtol=rtol, atol=atol)


if __name__ == "__main__":
    key = jax.random.PRNGKey(0)
    k1, k2, k3, k4 = jax.random.split(key, 4)

    # Toy shape (module-consistent), exact f32 path, single time tile.
    _run_case(B=2, C=4, T=16, dilation=2, compute_dtype=jnp.float32,
              tt_max=1024, rtol=1e-5, atol=1e-5, key=k1)

    # Multi-tile time axis: halo / reflection handling at tile edges.
    _run_case(B=1, C=8, T=256, dilation=3, compute_dtype=jnp.float32,
              tt_max=128, rtol=1e-5, atol=1e-5, key=k2)

    # Non-divisible T: exercises the reflection-correct time-padding path.
    _run_case(B=1, C=8, T=200, dilation=2, compute_dtype=jnp.float32,
              tt_max=128, rtol=1e-5, atol=1e-5, key=k3)

    # bf16 fast path (half HBM traffic, MXU-native), f32 accumulation.
    _run_case(B=2, C=8, T=256, dilation=1, compute_dtype=jnp.bfloat16,
              tt_max=128, rtol=6e-2, atol=6e-2, key=k4)

    print("KERNEL_OK")
</pallas_src>

<mosaic_0001>
module attributes {stable_mosaic.version = 11 : i64} {
  func.func @_res_stack_kernel(%arg0: i32, %arg1: i32, %arg2: memref<1x4x16xf32, #tpu.memory_space<vmem>>, %arg3: memref<1x1x4x128xf32, #tpu.memory_space<vmem>>, %arg4: memref<3x4x4xf32, #tpu.memory_space<vmem>>, %arg5: memref<4x1xf32, #tpu.memory_space<vmem>>, %arg6: memref<4x4xf32, #tpu.memory_space<vmem>>, %arg7: memref<4x4xf32, #tpu.memory_space<vmem>>, %arg8: memref<4x1xf32, #tpu.memory_space<vmem>>, %arg9: memref<1x4x16xf32, #tpu.memory_space<vmem>>) attributes {dimension_semantics = [#tpu.dimension_semantics<parallel>, #tpu.dimension_semantics<parallel>], iteration_bounds = array<i64: 2, 1>, scalar_prefetch = 0 : i64, scratch_operands = 0 : i64, tpu.core_type = #tpu.core_type<tc>, window_params = [{transform_indices = @transform_0, window_bounds = array<i64: 1, 4, 16>}, {transform_indices = @transform_1, window_bounds = array<i64: 1, 1, 4, 128>}, {pipeline_mode = #tpu.pipeline_mode<synchronous>, transform_indices = @transform_2, window_bounds = array<i64: 3, 4, 4>}, {pipeline_mode = #tpu.pipeline_mode<synchronous>, transform_indices = @transform_3, window_bounds = array<i64: 4, 1>}, {pipeline_mode = #tpu.pipeline_mode<synchronous>, transform_indices = @transform_4, window_bounds = array<i64: 4, 4>}, {pipeline_mode = #tpu.pipeline_mode<synchronous>, transform_indices = @transform_5, window_bounds = array<i64: 4, 4>}, {pipeline_mode = #tpu.pipeline_mode<synchronous>, transform_indices = @transform_6, window_bounds = array<i64: 4, 1>}, {transform_indices = @transform_7, window_bounds = array<i64: 1, 4, 16>}]} {
    %c0 = arith.constant 0 : index
    %c0_0 = arith.constant 0 : index
    %c0_1 = arith.constant 0 : index
    %0 = vector.load %arg2[%c0, %c0_0, %c0_1] : memref<1x4x16xf32, #tpu.memory_space<vmem>>, vector<1x4x16xf32>
    %1 = vector.shape_cast %0 : vector<1x4x16xf32> to vector<4x16xf32>
    %c0_2 = arith.constant 0 : index
    %c0_3 = arith.constant 0 : index
    %c0_4 = arith.constant 0 : index
    %c0_5 = arith.constant 0 : index
    %2 = vector.load %arg3[%c0_2, %c0_3, %c0_4, %c0_5] : memref<1x1x4x128xf32, #tpu.memory_space<vmem>>, vector<1x1x4x128xf32>
    %3 = vector.shape_cast %2 : vector<1x1x4x128xf32> to vector<4x128xf32>
    %cst = arith.constant 0.000000e+00 : f32
    %4 = vector.broadcast %cst : f32 to vector<4x16xf32>
    %5 = arith.cmpf oge, %1, %4 : vector<4x16xf32>
    %cst_6 = arith.constant 2.000000e-01 : f32
    %6 = vector.broadcast %cst_6 : f32 to vector<4x16xf32>
    %7 = arith.mulf %6, %1 : vector<4x16xf32>
    %8 = arith.select %5, %1, %7 : vector<4x16xi1>, vector<4x16xf32>
    %9 = vector.extract_strided_slice %3 {offsets = [0, 0], sizes = [4, 2], strides = [1, 1]} : vector<4x128xf32> to vector<4x2xf32>
    %cst_7 = arith.constant 0.000000e+00 : f32
    %10 = vector.broadcast %cst_7 : f32 to vector<4x2xf32>
    %11 = arith.cmpf oge, %9, %10 : vector<4x2xf32>
    %cst_8 = arith.constant 2.000000e-01 : f32
    %12 = vector.broadcast %cst_8 : f32 to vector<4x2xf32>
    %13 = arith.mulf %12, %9 : vector<4x2xf32>
    %14 = arith.select %11, %9, %13 : vector<4x2xi1>, vector<4x2xf32>
    %15 = vector.extract_strided_slice %3 {offsets = [0, 2], sizes = [4, 2], strides = [1, 1]} : vector<4x128xf32> to vector<4x2xf32>
    %cst_9 = arith.constant 0.000000e+00 : f32
    %16 = vector.broadcast %cst_9 : f32 to vector<4x2xf32>
    %17 = arith.cmpf oge, %15, %16 : vector<4x2xf32>
    %cst_10 = arith.constant 2.000000e-01 : f32
    %18 = vector.broadcast %cst_10 : f32 to vector<4x2xf32>
    %19 = arith.mulf %18, %15 : vector<4x2xf32>
    %20 = arith.select %17, %15, %19 : vector<4x2xi1>, vector<4x2xf32>
    %21 = vector.extract_strided_slice %8 {offsets = [0, 0], sizes = [4, 14], strides = [1, 1]} : vector<4x16xf32> to vector<4x14xf32>
    %22 = tpu.concatenate %14, %21 in 1 : vector<4x2xf32>, vector<4x14xf32> -> vector<4x16xf32>
    %23 = vector.extract_strided_slice %8 {offsets = [0, 2], sizes = [4, 14], strides = [1, 1]} : vector<4x16xf32> to vector<4x14xf32>
    %24 = tpu.concatenate %23, %20 in 1 : vector<4x14xf32>, vector<4x2xf32> -> vector<4x16xf32>
    %c0_11 = arith.constant 0 : index
    %c0_12 = arith.constant 0 : index
    %c0_13 = arith.constant 0 : index
    %25 = vector.load %arg4[%c0_11, %c0_12, %c0_13] : memref<3x4x4xf32, #tpu.memory_space<vmem>>, vector<1x4x4xf32>
    %26 = vector.shape_cast %25 : vector<1x4x4xf32> to vector<4x4xf32>
    %cst_14 = arith.constant dense<0.000000e+00> : vector<4x16xf32>
    %27 = tpu.matmul %26, %22, %cst_14 {dimension_numbers = #tpu.dot_dimension_numbers<[1], [0], [0], [1], [0, 0, 1, 1], [], []>} : vector<4x4xf32>, vector<4x16xf32>, vector<4x16xf32> -> vector<4x16xf32>
    %c1 = arith.constant 1 : index
    %c0_15 = arith.constant 0 : index
    %c0_16 = arith.constant 0 : index
    %28 = vector.load %arg4[%c1, %c0_15, %c0_16] : memref<3x4x4xf32, #tpu.memory_space<vmem>>, vector<1x4x4xf32>
    %29 = vector.shape_cast %28 : vector<1x4x4xf32> to vector<4x4xf32>
    %cst_17 = arith.constant dense<0.000000e+00> : vector<4x16xf32>
    %30 = tpu.matmul %29, %8, %cst_17 {dimension_numbers = #tpu.dot_dimension_numbers<[1], [0], [0], [1], [0, 0, 1, 1], [], []>} : vector<4x4xf32>, vector<4x16xf32>, vector<4x16xf32> -> vector<4x16xf32>
    %31 = arith.addf %27, %30 : vector<4x16xf32>
    %c2 = arith.constant 2 : index
    %c0_18 = arith.constant 0 : index
    %c0_19 = arith.constant 0 : index
    %32 = vector.load %arg4[%c2, %c0_18, %c0_19] : memref<3x4x4xf32, #tpu.memory_space<vmem>>, vector<1x4x4xf32>
    %33 = vector.shape_cast %32 : vector<1x4x4xf32> to vector<4x4xf32>
    %cst_20 = arith.constant dense<0.000000e+00> : vector<4x16xf32>
    %34 = tpu.matmul %33, %24, %cst_20 {dimension_numbers = #tpu.dot_dimension_numbers<[1], [0], [0], [1], [0, 0, 1, 1], [], []>} : vector<4x4xf32>, vector<4x16xf32>, vector<4x16xf32> -> vector<4x16xf32>
    %35 = arith.addf %31, %34 : vector<4x16xf32>
    %c0_21 = arith.constant 0 : index
    %c0_22 = arith.constant 0 : index
    %36 = vector.load %arg5[%c0_21, %c0_22] : memref<4x1xf32, #tpu.memory_space<vmem>>, vector<4x1xf32>
    %37 = vector.broadcast %36 : vector<4x1xf32> to vector<4x16xf32>
    %38 = arith.addf %35, %37 : vector<4x16xf32>
    %cst_23 = arith.constant 0.000000e+00 : f32
    %39 = vector.broadcast %cst_23 : f32 to vector<4x16xf32>
    %40 = arith.cmpf oge, %38, %39 : vector<4x16xf32>
    %cst_24 = arith.constant 2.000000e-01 : f32
    %41 = vector.broadcast %cst_24 : f32 to vector<4x16xf32>
    %42 = arith.mulf %41, %38 : vector<4x16xf32>
    %43 = arith.select %40, %38, %42 : vector<4x16xi1>, vector<4x16xf32>
    %c0_25 = arith.constant 0 : index
    %c0_26 = arith.constant 0 : index
    %44 = vector.load %arg6[%c0_25, %c0_26] : memref<4x4xf32, #tpu.memory_space<vmem>>, vector<4x4xf32>
    %cst_27 = arith.constant dense<0.000000e+00> : vector<4x16xf32>
    %45 = tpu.matmul %44, %1, %cst_27 {dimension_numbers = #tpu.dot_dimension_numbers<[1], [0], [0], [1], [0, 0, 1, 1], [], []>} : vector<4x4xf32>, vector<4x16xf32>, vector<4x16xf32> -> vector<4x16xf32>
    %c0_28 = arith.constant 0 : index
    %c0_29 = arith.constant 0 : index
    %46 = vector.load %arg7[%c0_28, %c0_29] : memref<4x4xf32, #tpu.memory_space<vmem>>, vector<4x4xf32>
    %cst_30 = arith.constant dense<0.000000e+00> : vector<4x16xf32>
    %47 = tpu.matmul %46, %43, %cst_30 {dimension_numbers = #tpu.dot_dimension_numbers<[1], [0], [0], [1], [0, 0, 1, 1], [], []>} : vector<4x4xf32>, vector<4x16xf32>, vector<4x16xf32> -> vector<4x16xf32>
    %48 = arith.addf %45, %47 : vector<4x16xf32>
    %c0_31 = arith.constant 0 : index
    %c0_32 = arith.constant 0 : index
    %49 = vector.load %arg8[%c0_31, %c0_32] : memref<4x1xf32, #tpu.memory_space<vmem>>, vector<4x1xf32>
    %50 = vector.broadcast %49 : vector<4x1xf32> to vector<4x16xf32>
    %51 = arith.addf %48, %50 : vector<4x16xf32>
    %c0_33 = arith.constant 0 : index
    %c0_34 = arith.constant 0 : index
    %c0_35 = arith.constant 0 : index
    %52 = vector.load %arg9[%c0_33, %c0_34, %c0_35] : memref<1x4x16xf32, #tpu.memory_space<vmem>>, vector<1x4x16xf32>
    %53 = vector.shape_cast %52 : vector<1x4x16xf32> to vector<4x16xf32>
    %54 = vector.shape_cast %51 : vector<4x16xf32> to vector<1x4x16xf32>
    tpu.vector_store %arg9[%c0_33, %c0_34, %c0_35], %54 {strides = array<i32>} : memref<1x4x16xf32, #tpu.memory_space<vmem>>, vector<1x4x16xf32>,
    return
  }
  func.func @transform_0(%arg0: i32, %arg1: i32) -> (i32, i32, i32) {
    %c0_i32 = arith.constant 0 : i32
    %c0_i32_0 = arith.constant 0 : i32
    return %arg0, %c0_i32, %arg1 : i32, i32, i32
  }
  func.func @transform_1(%arg0: i32, %arg1: i32) -> (i32, i32, i32, i32) {
    %c0_i32 = arith.constant 0 : i32
    %c0_i32_0 = arith.constant 0 : i32
    %c0_i32_1 = arith.constant 0 : i32
    return %arg0, %arg1, %c0_i32, %c0_i32_0 : i32, i32, i32, i32
  }
  func.func @transform_2(%arg0: i32, %arg1: i32) -> (i32, i32, i32) {
    %c0_i32 = arith.constant 0 : i32
    %c0_i32_0 = arith.constant 0 : i32
    %c0_i32_1 = arith.constant 0 : i32
    %c0_i32_2 = arith.constant 0 : i32
    return %c0_i32, %c0_i32_0, %c0_i32_1 : i32, i32, i32
  }
  func.func @transform_3(%arg0: i32, %arg1: i32) -> (i32, i32) {
    %c0_i32 = arith.constant 0 : i32
    %c0_i32_0 = arith.constant 0 : i32
    %c0_i32_1 = arith.constant 0 : i32
    return %c0_i32, %c0_i32_0 : i32, i32
  }
  func.func @transform_4(%arg0: i32, %arg1: i32) -> (i32, i32) {
    %c0_i32 = arith.constant 0 : i32
    %c0_i32_0 = arith.constant 0 : i32
    %c0_i32_1 = arith.constant 0 : i32
    return %c0_i32, %c0_i32_0 : i32, i32
  }
  func.func @transform_5(%arg0: i32, %arg1: i32) -> (i32, i32) {
    %c0_i32 = arith.constant 0 : i32
    %c0_i32_0 = arith.constant 0 : i32
    %c0_i32_1 = arith.constant 0 : i32
    return %c0_i32, %c0_i32_0 : i32, i32
  }
  func.func @transform_6(%arg0: i32, %arg1: i32) -> (i32, i32) {
    %c0_i32 = arith.constant 0 : i32
    %c0_i32_0 = arith.constant 0 : i32
    %c0_i32_1 = arith.constant 0 : i32
    return %c0_i32, %c0_i32_0 : i32, i32
  }
  func.func @transform_7(%arg0: i32, %arg1: i32) -> (i32, i32, i32) {
    %c0_i32 = arith.constant 0 : i32
    %c0_i32_0 = arith.constant 0 : i32
    return %arg0, %c0_i32, %arg1 : i32, i32, i32
  }
}

module attributes {stable_mosaic.version = 11 : i64} {
  func.func @_res_stack_kernel(%arg0: i32, %arg1: i32, %arg2: memref<1x4x16xf32, #tpu.memory_space<vmem>>, %arg3: memref<1x1x4x128xf32, #tpu.memory_space<vmem>>, %arg4: memref<3x4x4xf32, #tpu.memory_space<vmem>>, %arg5: memref<4x1xf32, #tpu.memory_space<vmem>>, %arg6: memref<4x4xf32, #tpu.memory_space<vmem>>, %arg7: memref<4x4xf32, #tpu.memory_space<vmem>>, %arg8: memref<4x1xf32, #tpu.memory_space<vmem>>, %arg9: memref<1x4x16xf32, #tpu.memory_space<vmem>>) attributes {dimension_semantics = [#tpu.dimension_semantics<parallel>, #tpu.dimension_semantics<parallel>], iteration_bounds = array<i64: 2, 1>, scalar_prefetch = 0 : i64, scratch_operands = 0 : i64, tpu.core_type = #tpu.core_type<tc>, window_params = [{transform_indices = @transform_0, window_bounds = array<i64: 1, 4, 16>}, {transform_indices = @transform_1, window_bounds = array<i64: 1, 1, 4, 128>}, {pipeline_mode = #tpu.pipeline_mode<synchronous>, transform_indices = @transform_2, window_bounds = array<i64: 3, 4, 4>}, {pipeline_mode = #tpu.pipeline_mode<synchronous>, transform_indices = @transform_3, window_bounds = array<i64: 4, 1>}, {pipeline_mode = #tpu.pipeline_mode<synchronous>, transform_indices = @transform_4, window_bounds = array<i64: 4, 4>}, {pipeline_mode = #tpu.pipeline_mode<synchronous>, transform_indices = @transform_5, window_bounds = array<i64: 4, 4>}, {pipeline_mode = #tpu.pipeline_mode<synchronous>, transform_indices = @transform_6, window_bounds = array<i64: 4, 1>}, {transform_indices = @transform_7, window_bounds = array<i64: 1, 4, 16>}]} {
    %c0 = arith.constant 0 : index
    %c0_0 = arith.constant 0 : index
    %c0_1 = arith.constant 0 : index
    %0 = vector.load %arg2[%c0, %c0_0, %c0_1] : memref<1x4x16xf32, #tpu.memory_space<vmem>>, vector<1x4x16xf32>
    %1 = vector.shape_cast %0 : vector<1x4x16xf32> to vector<4x16xf32>
    %c0_2 = arith.constant 0 : index
    %c0_3 = arith.constant 0 : index
    %c0_4 = arith.constant 0 : index
    %c0_5 = arith.constant 0 : index
    %2 = vector.load %arg3[%c0_2, %c0_3, %c0_4, %c0_5] : memref<1x1x4x128xf32, #tpu.memory_space<vmem>>, vector<1x1x4x128xf32>
    %3 = vector.shape_cast %2 : vector<1x1x4x128xf32> to vector<4x128xf32>
    %cst = arith.constant 0.000000e+00 : f32
    %4 = vector.broadcast %cst : f32 to vector<4x16xf32>
    %5 = arith.cmpf oge, %1, %4 : vector<4x16xf32>
    %cst_6 = arith.constant 2.000000e-01 : f32
    %6 = vector.broadcast %cst_6 : f32 to vector<4x16xf32>
    %7 = arith.mulf %6, %1 : vector<4x16xf32>
    %8 = arith.select %5, %1, %7 : vector<4x16xi1>, vector<4x16xf32>
    %9 = vector.extract_strided_slice %3 {offsets = [0, 0], sizes = [4, 2], strides = [1, 1]} : vector<4x128xf32> to vector<4x2xf32>
    %cst_7 = arith.constant 0.000000e+00 : f32
    %10 = vector.broadcast %cst_7 : f32 to vector<4x2xf32>
    %11 = arith.cmpf oge, %9, %10 : vector<4x2xf32>
    %cst_8 = arith.constant 2.000000e-01 : f32
    %12 = vector.broadcast %cst_8 : f32 to vector<4x2xf32>
    %13 = arith.mulf %12, %9 : vector<4x2xf32>
    %14 = arith.select %11, %9, %13 : vector<4x2xi1>, vector<4x2xf32>
    %15 = vector.extract_strided_slice %3 {offsets = [0, 2], sizes = [4, 2], strides = [1, 1]} : vector<4x128xf32> to vector<4x2xf32>
    %cst_9 = arith.constant 0.000000e+00 : f32
    %16 = vector.broadcast %cst_9 : f32 to vector<4x2xf32>
    %17 = arith.cmpf oge, %15, %16 : vector<4x2xf32>
    %cst_10 = arith.constant 2.000000e-01 : f32
    %18 = vector.broadcast %cst_10 : f32 to vector<4x2xf32>
    %19 = arith.mulf %18, %15 : vector<4x2xf32>
    %20 = arith.select %17, %15, %19 : vector<4x2xi1>, vector<4x2xf32>
    %21 = vector.extract_strided_slice %8 {offsets = [0, 0], sizes = [4, 14], strides = [1, 1]} : vector<4x16xf32> to vector<4x14xf32>
    %22 = tpu.concatenate %14, %21 in 1 : vector<4x2xf32>, vector<4x14xf32> -> vector<4x16xf32>
    %23 = vector.extract_strided_slice %8 {offsets = [0, 2], sizes = [4, 14], strides = [1, 1]} : vector<4x16xf32> to vector<4x14xf32>
    %24 = tpu.concatenate %23, %20 in 1 : vector<4x14xf32>, vector<4x2xf32> -> vector<4x16xf32>
    %c0_11 = arith.constant 0 : index
    %c0_12 = arith.constant 0 : index
    %c0_13 = arith.constant 0 : index
    %25 = vector.load %arg4[%c0_11, %c0_12, %c0_13] : memref<3x4x4xf32, #tpu.memory_space<vmem>>, vector<1x4x4xf32>
    %26 = vector.shape_cast %25 : vector<1x4x4xf32> to vector<4x4xf32>
    %cst_14 = arith.constant dense<0.000000e+00> : vector<4x16xf32>
    %27 = tpu.matmul %26, %22, %cst_14 {dimension_numbers = #tpu.dot_dimension_numbers<[1], [0], [0], [1], [0, 0, 1, 1], [], []>} : vector<4x4xf32>, vector<4x16xf32>, vector<4x16xf32> -> vector<4x16xf32>
    %c1 = arith.constant 1 : index
    %c0_15 = arith.constant 0 : index
    %c0_16 = arith.constant 0 : index
    %28 = vector.load %arg4[%c1, %c0_15, %c0_16] : memref<3x4x4xf32, #tpu.memory_space<vmem>>, vector<1x4x4xf32>
    %29 = vector.shape_cast %28 : vector<1x4x4xf32> to vector<4x4xf32>
    %cst_17 = arith.constant dense<0.000000e+00> : vector<4x16xf32>
    %30 = tpu.matmul %29, %8, %cst_17 {dimension_numbers = #tpu.dot_dimension_numbers<[1], [0], [0], [1], [0, 0, 1, 1], [], []>} : vector<4x4xf32>, vector<4x16xf32>, vector<4x16xf32> -> vector<4x16xf32>
    %31 = arith.addf %27, %30 : vector<4x16xf32>
    %c2 = arith.constant 2 : index
    %c0_18 = arith.constant 0 : index
    %c0_19 = arith.constant 0 : index
    %32 = vector.load %arg4[%c2, %c0_18, %c0_19] : memref<3x4x4xf32, #tpu.memory_space<vmem>>, vector<1x4x4xf32>
    %33 = vector.shape_cast %32 : vector<1x4x4xf32> to vector<4x4xf32>
    %cst_20 = arith.constant dense<0.000000e+00> : vector<4x16xf32>
    %34 = tpu.matmul %33, %24, %cst_20 {dimension_numbers = #tpu.dot_dimension_numbers<[1], [0], [0], [1], [0, 0, 1, 1], [], []>} : vector<4x4xf32>, vector<4x16xf32>, vector<4x16xf32> -> vector<4x16xf32>
    %35 = arith.addf %31, %34 : vector<4x16xf32>
    %c0_21 = arith.constant 0 : index
    %c0_22 = arith.constant 0 : index
    %36 = vector.load %arg5[%c0_21, %c0_22] : memref<4x1xf32, #tpu.memory_space<vmem>>, vector<4x1xf32>
    %37 = vector.broadcast %36 : vector<4x1xf32> to vector<4x16xf32>
    %38 = arith.addf %35, %37 : vector<4x16xf32>
    %cst_23 = arith.constant 0.000000e+00 : f32
    %39 = vector.broadcast %cst_23 : f32 to vector<4x16xf32>
    %40 = arith.cmpf oge, %38, %39 : vector<4x16xf32>
    %cst_24 = arith.constant 2.000000e-01 : f32
    %41 = vector.broadcast %cst_24 : f32 to vector<4x16xf32>
    %42 = arith.mulf %41, %38 : vector<4x16xf32>
    %43 = arith.select %40, %38, %42 : vector<4x16xi1>, vector<4x16xf32>
    %c0_25 = arith.constant 0 : index
    %c0_26 = arith.constant 0 : index
    %44 = vector.load %arg6[%c0_25, %c0_26] : memref<4x4xf32, #tpu.memory_space<vmem>>, vector<4x4xf32>
    %cst_27 = arith.constant dense<0.000000e+00> : vector<4x16xf32>
    %45 = tpu.matmul %44, %1, %cst_27 {dimension_numbers = #tpu.dot_dimension_numbers<[1], [0], [0], [1], [0, 0, 1, 1], [], []>} : vector<4x4xf32>, vector<4x16xf32>, vector<4x16xf32> -> vector<4x16xf32>
    %c0_28 = arith.constant 0 : index
    %c0_29 = arith.constant 0 : index
    %46 = vector.load %arg7[%c0_28, %c0_29] : memref<4x4xf32, #tpu.memory_space<vmem>>, vector<4x4xf32>
    %cst_30 = arith.constant dense<0.000000e+00> : vector<4x16xf32>
    %47 = tpu.matmul %46, %43, %cst_30 {dimension_numbers = #tpu.dot_dimension_numbers<[1], [0], [0], [1], [0, 0, 1, 1], [], []>} : vector<4x4xf32>, vector<4x16xf32>, vector<4x16xf32> -> vector<4x16xf32>
    %48 = arith.addf %45, %47 : vector<4x16xf32>
    %c0_31 = arith.constant 0 : index
    %c0_32 = arith.constant 0 : index
    %49 = vector.load %arg8[%c0_31, %c0_32] : memref<4x1xf32, #tpu.memory_space<vmem>>, vector<4x1xf32>
    %50 = vector.broadcast %49 : vector<4x1xf32> to vector<4x16xf32>
    %51 = arith.addf %48, %50 : vector<4x16xf32>
    %c0_33 = arith.constant 0 : index
    %c0_34 = arith.constant 0 : index
    %c0_35 = arith.constant 0 : index
    %52 = vector.load %arg9[%c0_33, %c0_34, %c0_35] : memref<1x4x16xf32, #tpu.memory_space<vmem>>, vector<1x4x16xf32>
    %53 = vector.shape_cast %52 : vector<1x4x16xf32> to vector<4x16xf32>
    %54 = vector.shape_cast %51 : vector<4x16xf32> to vector<1x4x16xf32>
    tpu.vector_store %arg9[%c0_33, %c0_34, %c0_35], %54 {strides = array<i32>} : memref<1x4x16xf32, #tpu.memory_space<vmem>>, vector<1x4x16xf32>,
    return
  }
  func.func @transform_0(%arg0: i32, %arg1: i32) -> (i32, i32, i32) {
    %c0_i32 = arith.constant 0 : i32
    %c0_i32_0 = arith.constant 0 : i32
    return %arg0, %c0_i32, %arg1 : i32, i32, i32
  }
  func.func @transform_1(%arg0: i32, %arg1: i32) -> (i32, i32, i32, i32) {
    %c0_i32 = arith.constant 0 : i32
    %c0_i32_0 = arith.constant 0 : i32
    %c0_i32_1 = arith.constant 0 : i32
    return %arg0, %arg1, %c0_i32, %c0_i32_0 : i32, i32, i32, i32
  }
  func.func @transform_2(%arg0: i32, %arg1: i32) -> (i32, i32, i32) {
    %c0_i32 = arith.constant 0 : i32
    %c0_i32_0 = arith.constant 0 : i32
    %c0_i32_1 = arith.constant 0 : i32
    %c0_i32_2 = arith.constant 0 : i32
    return %c0_i32, %c0_i32_0, %c0_i32_1 : i32, i32, i32
  }
  func.func @transform_3(%arg0: i32, %arg1: i32) -> (i32, i32) {
    %c0_i32 = arith.constant 0 : i32
    %c0_i32_0 = arith.constant 0 : i32
    %c0_i32_1 = arith.constant 0 : i32
    return %c0_i32, %c0_i32_0 : i32, i32
  }
  func.func @transform_4(%arg0: i32, %arg1: i32) -> (i32, i32) {
    %c0_i32 = arith.constant 0 : i32
    %c0_i32_0 = arith.constant 0 : i32
    %c0_i32_1 = arith.constant 0 : i32
    return %c0_i32, %c0_i32_0 : i32, i32
  }
  func.func @transform_5(%arg0: i32, %arg1: i32) -> (i32, i32) {
    %c0_i32 = arith.constant 0 : i32
    %c0_i32_0 = arith.constant 0 : i32
    %c0_i32_1 = arith.constant 0 : i32
    return %c0_i32, %c0_i32_0 : i32, i32
  }
  func.func @transform_6(%arg0: i32, %arg1: i32) -> (i32, i32) {
    %c0_i32 = arith.constant 0 : i32
    %c0_i32_0 = arith.constant 0 : i32
    %c0_i32_1 = arith.constant 0 : i32
    return %c0_i32, %c0_i32_0 : i32, i32
  }
  func.func @transform_7(%arg0: i32, %arg1: i32) -> (i32, i32, i32) {
    %c0_i32 = arith.constant 0 : i32
    %c0_i32_0 = arith.constant 0 : i32
    return %arg0, %c0_i32, %arg1 : i32, i32, i32
  }
}

</mosaic_0001>

<llo_original>
// kernel: tpu_custom_call.1
$region0: #{tpu_custom_call.1}
  #allocation0 [shape = 'u32[]', space=smem, size = 0x4, offset = 0x4, fixed_abs, tag = 'smem constant byte address 0x4 - core index']
  #allocation1 [shape = 'u32[72,128]{1,0:T(1,128)}', space=vmem, size = 0x9000, scoped, tag = 'internal scratch']
  %s0 = inlined_call_operand.vmem [shape: f32[2,4,16], index: 0, kind: input, shape index: {}]
  %s1 = inlined_call_operand.hbm [shape: f32[2,1,4,128], index: 1, kind: input, shape index: {}]
  %s2 = inlined_call_operand.hbm [shape: f32[3,4,4], index: 2, kind: input, shape index: {}]
  %s3 = inlined_call_operand.vmem [shape: f32[4,1], index: 3, kind: input, shape index: {}]
  %s4 = inlined_call_operand.hbm [shape: f32[4,4], index: 4, kind: input, shape index: {}]
  %s5 = inlined_call_operand.hbm [shape: f32[4,4], index: 5, kind: input, shape index: {}]
  %s6 = inlined_call_operand.vmem [shape: f32[4,1], index: 6, kind: input, shape index: {}]
  %s7 = inlined_call_operand.hbm [shape: f32[2,4,16], index: 7, kind: output, shape index: {}]
  %s8 = sld [smem:[#allocation0]]
  $region77: #{tpu_custom_call.1} parent=0
    _
  %s10 = ssub.s32 1, %s8
  %s11 = scalar_select 0, %s10, %s8
  $region1: #{tpu_custom_call.1} parent=0
    #allocation2 [shape = 'u8[4096]{0}', space=vmem, size = 0x1000, scoped, tag = 'input window, operand 1']
    #allocation3 [shape = 's32[2]{0}', space=sflag, size = 0x8, scoped, tag = 'scoped memory for tpu_custom_call.1']
    #allocation4 [shape = 's32[2]{0}', space=sflag, size = 0x8, scoped, tag = 'scoped memory for tpu_custom_call.1']
    #allocation5 [shape = 'u8[6144]{0}', space=vmem, size = 0x1800, scoped, tag = 'input window, operand 2, single buffered']
    #allocation6 [shape = 's32[1]{0}', space=sflag, size = 0x4, scoped, tag = 'scoped memory for tpu_custom_call.1']
    #allocation7 [shape = 'u8[2048]{0}', space=vmem, size = 0x800, scoped, tag = 'input window, operand 4, single buffered']
    #allocation8 [shape = 'u8[2048]{0}', space=vmem, size = 0x800, scoped, tag = 'input window, operand 5, single buffered']
    #allocation9 [shape = 's32[1]{0}', space=sflag, size = 0x4, scoped, tag = 'scoped memory for tpu_custom_call.1']
    #allocation10 [shape = 'u8[4096]{0}', space=vmem, size = 0x1000, scoped, tag = 'output window, operand 0']
    %12 = vsyncpa [#allocation3], 0
    %s13 = scalar_lea.sflag [#allocation3], 1
    %14 = vsyncpa %s13, 0
    %15 = vsyncpa [#allocation6], 0
    %16 = vsyncpa [#allocation9], 0
    %17 = vsyncpa [#allocation4], 0
    %s18 = scalar_lea.sflag [#allocation4], 1
    %19 = vsyncpa %s18, 0
    loop: start=0, step=1, limit=4
    $region2: #{tpu_custom_call.1} parent=1 // loop_pre_header
      _
    $region3: #{tpu_custom_call.1} parent=1 // loop_header
      %s21 = sphi 0, %s25
      %p22 = scmp.ge.s32.totalorder %s21, 4
      %s28 = sphi 0, %s40
      %s29 = sphi 0, %s36
      %s30 = sphi 0, %s28
      %s31 = sphi 0, %s29
      %s32 = sphi 0, %s30
      %s33 = sphi 0, %s31
      %s45 = sphi 0, %s47
      %s48 = sphi 0, %s45
      %s49 = sphi 0, %s48
      %s65 = sphi 0, %s49
      %s73 = sphi 0, %s75
      %s76 = sphi 0, %s73
      %s77 = sphi 0, %s76
      %s93 = sphi 0, %s77
      %s97 = sphi 0, %s97
      %s99 = sphi 0, %s97
      %s100 = sphi 0, %s99
      %s114 = sphi 0, %s100
      %s118 = sphi 0, %s118
      %s120 = sphi 0, %s118
      %s121 = sphi 0, %s120
      %s135 = sphi 0, %s121
      %s139 = sphi 0, %s139
      %s141 = sphi 0, %s139
      %s142 = sphi 0, %s141
      %s156 = sphi 0, %s142
      %s160 = sphi 0, %s160
      %s162 = sphi 0, %s160
      %s163 = sphi 0, %s162
      %s177 = sphi 0, %s163
      %s181 = sphi 0, %s181
      %s183 = sphi 0, %s181
      %s184 = sphi 0, %s183
      %s198 = sphi 0, %s184
      %s206 = sphi 0, %s208
      %s209 = sphi 0, %s206
      %s210 = sphi 0, %s209
      %s226 = sphi 0, %s210
    $region4: #{tpu_custom_call.1} parent=1 // loop_header_branch
      %24 = sbr.rel (%p22) target = $region8
    $region5: #{tpu_custom_call.1} parent=1 // loop_body
      %s26 = ssub.s32 %s21, 1
      %s27 = ssub.s32 %s21, 2
      %s34 = sadd.s32 1, %s29
      %p35 = scmp.ge.s32.totalorder %s34, 1
      %s36 = scalar_select %p35, 0, %s34
      %s37 = sadd.s32 1, %s28
      %s38 = scalar_select %p35, %s37, %s28
      %p39 = scmp.ge.s32.totalorder %s38, 2
      %s40 = scalar_select %p39, 0, %s38
      %s41 = ssub.s32 %s28, %s40
      %s42 = ssub.s32 %s29, %s36
      %s43 = sor.u32 %s41, %s42
      %p44 = scmp.eq.s32.totalorder %s43, 0
      %s46 = sadd.s32 %s45, 1
      %s47 = scalar_select %p44, %s45, %s46
      %p50 = pneg %p44
      %p51 = scmp.eq.s32.totalorder %s21, 1
      %p52 = por %p50, %p51
      %p53 = scmp.ne.s32.totalorder %s45, %s48
      %p54 = scmp.eq.s32.totalorder %s21, 0
      %p55 = por %p53, %p54
      %p56 = scmp.ne.s32.totalorder %s45, %s48
      %p57 = scmp.eq.s32.totalorder %s26, 1
      %p58 = por %p56, %p57
      %p59 = scmp.ne.s32.totalorder %s48, %s49
      %p60 = scmp.eq.s32.totalorder %s26, 0
      %p61 = por %p59, %p60
      %p62 = scmp.ne.s32.totalorder %s48, %s49
      %p63 = scmp.eq.s32.totalorder %s27, 1
      %p64 = por %p62, %p63
      %p66 = scmp.ne.s32.totalorder %s49, %s65
      %p67 = scmp.eq.s32.totalorder %s27, 0
      %p68 = por %p66, %p67
      %s69 = ssub.s32 %s28, %s40
      %s70 = ssub.s32 %s29, %s36
      %s71 = sor.u32 %s69, %s70
      %p72 = scmp.eq.s32.totalorder %s71, 0
      %s74 = sadd.s32 %s73, 1
      %s75 = scalar_select %p72, %s73, %s74
      %p78 = pneg %p72
      %p79 = scmp.eq.s32.totalorder %s21, 1
      %p80 = por %p78, %p79
      %p81 = scmp.ne.s32.totalorder %s73, %s76
      %p82 = scmp.eq.s32.totalorder %s21, 0
      %p83 = por %p81, %p82
      %p84 = scmp.ne.s32.totalorder %s73, %s76
      %p85 = scmp.eq.s32.totalorder %s26, 1
      %p86 = por %p84, %p85
      %p87 = scmp.ne.s32.totalorder %s76, %s77
      %p88 = scmp.eq.s32.totalorder %s26, 0
      %p89 = por %p87, %p88
      %p90 = scmp.ne.s32.totalorder %s76, %s77
      %p91 = scmp.eq.s32.totalorder %s27, 1
      %p92 = por %p90, %p91
      %p94 = scmp.ne.s32.totalorder %s77, %s93
      %p95 = scmp.eq.s32.totalorder %s27, 0
      %p96 = por %p94, %p95
      %s98 = sadd.s32 %s97, 1
      %p101 = scmp.eq.s32.totalorder %s21, 1
      %p102 = scmp.ne.s32.totalorder %s97, %s99
      %p103 = scmp.eq.s32.totalorder %s21, 0
      %p104 = por %p102, %p103
      %p105 = scmp.ne.s32.totalorder %s97, %s99
      %p106 = scmp.eq.s32.totalorder %s26, 1
      %p107 = por %p105, %p106
      %p108 = scmp.ne.s32.totalorder %s99, %s100
      %p109 = scmp.eq.s32.totalorder %s26, 0
      %p110 = por %p108, %p109
      %p111 = scmp.ne.s32.totalorder %s99, %s100
      %p112 = scmp.eq.s32.totalorder %s27, 1
      %p113 = por %p111, %p112
      %p115 = scmp.ne.s32.totalorder %s100, %s114
      %p116 = scmp.eq.s32.totalorder %s27, 0
      %p117 = por %p115, %p116
      %s119 = sadd.s32 %s118, 1
      %p122 = scmp.eq.s32.totalorder %s21, 1
      %p123 = scmp.ne.s32.totalorder %s118, %s120
      %p124 = scmp.eq.s32.totalorder %s21, 0
      %p125 = por %p123, %p124
      %p126 = scmp.ne.s32.totalorder %s118, %s120
      %p127 = scmp.eq.s32.totalorder %s26, 1
      %p128 = por %p126, %p127
      %p129 = scmp.ne.s32.totalorder %s120, %s121
      %p130 = scmp.eq.s32.totalorder %s26, 0
      %p131 = por %p129, %p130
      %p132 = scmp.ne.s32.totalorder %s120, %s121
      %p133 = scmp.eq.s32.totalorder %s27, 1
      %p134 = por %p132, %p133
      %p136 = scmp.ne.s32.totalorder %s121, %s135
      %p137 = scmp.eq.s32.totalorder %s27, 0
      %p138 = por %p136, %p137
      %s140 = sadd.s32 %s139, 1
      %p143 = scmp.eq.s32.totalorder %s21, 1
      %p144 = scmp.ne.s32.totalorder %s139, %s141
      %p145 = scmp.eq.s32.totalorder %s21, 0
      %p146 = por %p144, %p145
      %p147 = scmp.ne.s32.totalorder %s139, %s141
      %p148 = scmp.eq.s32.totalorder %s26, 1
      %p149 = por %p147, %p148
      %p150 = scmp.ne.s32.totalorder %s141, %s142
      %p151 = scmp.eq.s32.totalorder %s26, 0
      %p152 = por %p150, %p151
      %p153 = scmp.ne.s32.totalorder %s141, %s142
      %p154 = scmp.eq.s32.totalorder %s27, 1
      %p155 = por %p153, %p154
      %p157 = scmp.ne.s32.totalorder %s142, %s156
      %p158 = scmp.eq.s32.totalorder %s27, 0
      %p159 = por %p157, %p158
      %s161 = sadd.s32 %s160, 1
      %p164 = scmp.eq.s32.totalorder %s21, 1
      %p165 = scmp.ne.s32.totalorder %s160, %s162
      %p166 = scmp.eq.s32.totalorder %s21, 0
      %p167 = por %p165, %p166
      %p168 = scmp.ne.s32.totalorder %s160, %s162
      %p169 = scmp.eq.s32.totalorder %s26, 1
      %p170 = por %p168, %p169
      %p171 = scmp.ne.s32.totalorder %s162, %s163
      %p172 = scmp.eq.s32.totalorder %s26, 0
      %p173 = por %p171, %p172
      %p174 = scmp.ne.s32.totalorder %s162, %s163
      %p175 = scmp.eq.s32.totalorder %s27, 1
      %p176 = por %p174, %p175
      %p178 = scmp.ne.s32.totalorder %s163, %s177
      %p179 = scmp.eq.s32.totalorder %s27, 0
      %p180 = por %p178, %p179
      %s182 = sadd.s32 %s181, 1
      %p185 = scmp.eq.s32.totalorder %s21, 1
      %p186 = scmp.ne.s32.totalorder %s181, %s183
      %p187 = scmp.eq.s32.totalorder %s21, 0
      %p188 = por %p186, %p187
      %p189 = scmp.ne.s32.totalorder %s181, %s183
      %p190 = scmp.eq.s32.totalorder %s26, 1
      %p191 = por %p189, %p190
      %p192 = scmp.ne.s32.totalorder %s183, %s184
      %p193 = scmp.eq.s32.totalorder %s26, 0
      %p194 = por %p192, %p193
      %p195 = scmp.ne.s32.totalorder %s183, %s184
      %p196 = scmp.eq.s32.totalorder %s27, 1
      %p197 = por %p195, %p196
      %p199 = scmp.ne.s32.totalorder %s184, %s198
      %p200 = scmp.eq.s32.totalorder %s27, 0
      %p201 = por %p199, %p200
      %s202 = ssub.s32 %s28, %s40
      %s203 = ssub.s32 %s29, %s36
      %s204 = sor.u32 %s202, %s203
      %p205 = scmp.eq.s32.totalorder %s204, 0
      %s207 = sadd.s32 %s206, 1
      %s208 = scalar_select %p205, %s206, %s207
      %p211 = pneg %p205
      %p212 = scmp.eq.s32.totalorder %s21, 1
      %p213 = por %p211, %p212
      %p214 = scmp.ne.s32.totalorder %s206, %s209
      %p215 = scmp.eq.s32.totalorder %s21, 0
      %p216 = por %p214, %p215
      %p217 = scmp.ne.s32.totalorder %s206, %s209
      %p218 = scmp.eq.s32.totalorder %s26, 1
      %p219 = por %p217, %p218
      %p220 = scmp.ne.s32.totalorder %s209, %s210
      %p221 = scmp.eq.s32.totalorder %s26, 0
      %p222 = por %p220, %p221
      %p223 = scmp.ne.s32.totalorder %s209, %s210
      %p224 = scmp.eq.s32.totalorder %s27, 1
      %p225 = por %p223, %p224
      %p227 = scmp.ne.s32.totalorder %s210, %s226
      %p228 = scmp.eq.s32.totalorder %s27, 0
      %p229 = por %p227, %p228
      %p230 = scmp.le.s32.totalorder 1, %s21
      %p231 = scmp.lt.s32.totalorder %s21, 3
      %p232 = pnand %p230, %p231
      %p233 = pneg %p232
      // Predicated region
      $region9: #{tpu_custom_call.1} parent=5 // pred_check
        _
      $region10: #{tpu_custom_call.1} parent=5 // pred_check_branch
        %235 = sbr.rel (%p232) target = $region12
      $region11: #{tpu_custom_call.1} parent=5 // pred_region
        %s236 = ssub.s32 %s21, 1
        // Predicated region
        $region13: #{tpu_custom_call.1} parent=11 // pred_check
          %p237 = pneg %p110
        $region14: #{tpu_custom_call.1} parent=11 // pred_check_branch
          %239 = sbr.rel (%p237) target = $region16
        $region15: #{tpu_custom_call.1} parent=11 // pred_region
          %241 = vsyncadd [#allocation6], 0
          %s242 = sshll.u32 %s2, 4
          %s243 = int_to_ptr.hbm [resolvable:$true] %s242
          %s244 = sshll.u32 [#allocation5], 4
          %s245 = int_to_ptr.vmem [resolvable:$true] %s244
          %250 = dma.hbm_to_vmem [thread:$0]  %s243, 192, %s245, [#allocation6], 64, 64, 4
        $region16: #{tpu_custom_call.1} parent=11 // pred_fallthru
          _
        // Predicated region
        $region17: #{tpu_custom_call.1} parent=11 // pred_check
          %p251 = pneg %p131
        $region18: #{tpu_custom_call.1} parent=11 // pred_check_branch
          %253 = sbr.rel (%p251) target = $region20
        $region19: #{tpu_custom_call.1} parent=11 // pred_region
          _
        $region20: #{tpu_custom_call.1} parent=11 // pred_fallthru
          _
        // Predicated region
        $region21: #{tpu_custom_call.1} parent=11 // pred_check
          %p254 = pneg %p152
        $region22: #{tpu_custom_call.1} parent=11 // pred_check_branch
          %256 = sbr.rel (%p254) target = $region24
        $region23: #{tpu_custom_call.1} parent=11 // pred_region
          %258 = vsyncadd [#allocation6], 0
          %s260 = sshll.u32 %s4, 4
          %s261 = int_to_ptr.hbm [resolvable:$true] %s260
          %s262 = sshll.u32 [#allocation7], 4
          %s263 = int_to_ptr.vmem [resolvable:$true] %s262
          %265 = dma.hbm_to_vmem [thread:$0]  %s261, 64, %s263, [#allocation6]
        $region24: #{tpu_custom_call.1} parent=11 // pred_fallthru
          _
        // Predicated region
        $region25: #{tpu_custom_call.1} parent=11 // pred_check
          %p266 = pneg %p173
        $region26: #{tpu_custom_call.1} parent=11 // pred_check_branch
          %268 = sbr.rel (%p266) target = $region28
        $region27: #{tpu_custom_call.1} parent=11 // pred_region
          %270 = vsyncadd [#allocation9], 0
          %s272 = sshll.u32 %s5, 4
          %s273 = int_to_ptr.hbm [resolvable:$true] %s272
          %s274 = sshll.u32 [#allocation8], 4
          %s275 = int_to_ptr.vmem [resolvable:$true] %s274
          %277 = dma.hbm_to_vmem [thread:$0]  %s273, 64, %s275, [#allocation9]
        $region28: #{tpu_custom_call.1} parent=11 // pred_fallthru
          _
        // Predicated region
        $region29: #{tpu_custom_call.1} parent=11 // pred_check
          %p278 = pneg %p194
        $region30: #{tpu_custom_call.1} parent=11 // pred_check_branch
          %280 = sbr.rel (%p278) target = $region32
        $region31: #{tpu_custom_call.1} parent=11 // pred_region
          _
        $region32: #{tpu_custom_call.1} parent=11 // pred_fallthru
          _
      $region12: #{tpu_custom_call.1} parent=5 // pred_fallthru
        _
      %p281 = scmp.lt.s32.totalorder %s21, 2
      // Predicated region
      $region33: #{tpu_custom_call.1} parent=5 // pred_check
        %p282 = pneg %p281
      $region34: #{tpu_custom_call.1} parent=5 // pred_check_branch
        %284 = sbr.rel (%p282) target = $region36
      $region35: #{tpu_custom_call.1} parent=5 // pred_region
        // Predicated region
        $region37: #{tpu_custom_call.1} parent=35 // pred_check
          %p285 = pneg %p55
        $region38: #{tpu_custom_call.1} parent=35 // pred_check_branch
          %287 = sbr.rel (%p285) target = $region40
        $region39: #{tpu_custom_call.1} parent=35 // pred_region
          %p288 = scmp.lt.s32.totalorder %s28, 1
          %s289 = scalar_select %p288, %s28, 1
          %p290 = scmp.lt.s32.totalorder %s29, 0
          %s291 = scalar_select %p290, %s29, 0
          %s292 = sadd.s32 %s291, %s289
          %s293 = smul.addr %s292, 4
          %s294 = scalar_lea.vmem %s0, %s293
        $region40: #{tpu_custom_call.1} parent=35 // pred_fallthru
          _
        // Predicated region
        $region41: #{tpu_custom_call.1} parent=35 // pred_check
          %p295 = pneg %p83
        $region42: #{tpu_custom_call.1} parent=35 // pred_check_branch
          %297 = sbr.rel (%p295) target = $region44
        $region43: #{tpu_custom_call.1} parent=35 // pred_region
          %s298 = sand.u32 %s73, 1
          %s299 = scalar_lea.sflag [#allocation3], %s298
          %s300 = sand.u32 %s73, 1
          %s301 = smul.addr %s300, 4
          %s302 = scalar_lea.vmem [#allocation2], %s301
          %304 = vsyncadd %s299, 0
          %s305 = sadd.s32 %s29, %s28
          %s306 = smul.addr %s305, 4
          %s307 = scalar_lea.hbm %s1, %s306
          %s309 = sshll.u32 %s307, 4
          %s310 = int_to_ptr.hbm [resolvable:$true] %s309
          %s311 = sshll.u32 %s302, 4
          %s312 = int_to_ptr.vmem [resolvable:$true] %s311
          %314 = dma.hbm_to_vmem [thread:$0]  %s310, 64, %s312, %s299
        $region44: #{tpu_custom_call.1} parent=35 // pred_fallthru
          _
      $region36: #{tpu_custom_call.1} parent=5 // pred_fallthru
        _
      %p315 = scmp.le.s32.totalorder 1, %s21
      %p316 = scmp.lt.s32.totalorder %s21, 3
      %p317 = pnand %p315, %p316
      %p318 = pneg %p317
      // Predicated region
      $region45: #{tpu_custom_call.1} parent=5 // pred_check
        _
      $region46: #{tpu_custom_call.1} parent=5 // pred_check_branch
        %320 = sbr.rel (%p317) target = $region48
      $region47: #{tpu_custom_call.1} parent=5 // pred_region
        %s321 = ssub.s32 %s21, 1
        %s322 = sand.u32 %s76, 1
        %s323 = scalar_lea.sflag [#allocation3], %s322
        %s324 = sand.u32 %s76, 1
        %s325 = smul.addr %s324, 4
        %s326 = scalar_lea.vmem [#allocation2], %s325
        // Predicated region
        $region49: #{tpu_custom_call.1} parent=47 // pred_check
          %p327 = pneg %p89
        $region50: #{tpu_custom_call.1} parent=47 // pred_check_branch
          %329 = sbr.rel (%p327) target = $region52
        $region51: #{tpu_custom_call.1} parent=47 // pred_region
          %331 = dma.done %s323, 64
        $region52: #{tpu_custom_call.1} parent=47 // pred_fallthru
          _
        // Predicated region
        $region53: #{tpu_custom_call.1} parent=47 // pred_check
          %p332 = pneg %p110
        $region54: #{tpu_custom_call.1} parent=47 // pred_check_branch
          %334 = sbr.rel (%p332) target = $region56
        $region55: #{tpu_custom_call.1} parent=47 // pred_region
          %336 = dma.done [#allocation6], 192
        $region56: #{tpu_custom_call.1} parent=47 // pred_fallthru
          _
        // Predicated region
        $region57: #{tpu_custom_call.1} parent=47 // pred_check
          %p337 = pneg %p152
        $region58: #{tpu_custom_call.1} parent=47 // pred_check_branch
          %339 = sbr.rel (%p337) target = $region60
        $region59: #{tpu_custom_call.1} parent=47 // pred_region
          %341 = dma.done [#allocation6], 64
        $region60: #{tpu_custom_call.1} parent=47 // pred_fallthru
          _
        // Predicated region
        $region61: #{tpu_custom_call.1} parent=47 // pred_check
          %p342 = pneg %p173
        $region62: #{tpu_custom_call.1} parent=47 // pred_check_branch
          %344 = sbr.rel (%p342) target = $region64
        $region63: #{tpu_custom_call.1} parent=47 // pred_region
          %346 = dma.done [#allocation9], 64
        $region64: #{tpu_custom_call.1} parent=47 // pred_fallthru
          _
        %p347 = scmp.lt.s32.totalorder %s30, 1
        %s348 = scalar_select %p347, %s30, 1
        %p349 = scmp.lt.s32.totalorder %s31, 0
        %s350 = scalar_select %p349, %s31, 0
        %s351 = sadd.s32 %s350, %s348
        %s352 = smul.addr %s351, 4
        %s353 = scalar_lea.vmem %s0, %s352
        %p354 = pneg %p61
        %p355 = pneg %p58
        %s356 = sand.u32 %s76, 1
        %s357 = scalar_lea.sflag [#allocation3], %s356
        %s358 = sand.u32 %s76, 1
        %s359 = smul.addr %s358, 4
        %s360 = scalar_lea.vmem [#allocation2], %s359
        %p361 = pneg %p89
        %p362 = pneg %p86
        %p363 = pneg %p110
        %p364 = pneg %p107
        %p365 = pneg %p131
        %p366 = pneg %p128
        %p367 = pneg %p152
        %p368 = pneg %p149
        %p369 = pneg %p173
        %p370 = pneg %p170
        %p371 = pneg %p194
        %p372 = pneg %p191
        %p373 = pneg %p222
        %p374 = pneg %p219
        %s375 = sand.u32 %s209, 1
        %s376 = scalar_lea.sflag [#allocation4], %s375
        %s377 = sand.u32 %s209, 1
        %s378 = smul.addr %s377, 4
        %s379 = scalar_lea.vmem [#allocation10], %s378
        %p380 = scmp.lt.s32.totalorder %s30, 1
        %s381 = scalar_select %p380, %s30, 1
        %p382 = scmp.lt.s32.totalorder %s31, 0
        %s383 = scalar_select %p382, %s31, 0
        %s384 = sadd.s32 %s383, %s381
        %s385 = smul.addr %s384, 4
        %s386 = scalar_lea.vmem %s0, %s385
        %v387 = vld [vmem:[%s386] sm:$0xf]
        %v388 = vld [vmem:[%s326] sm:$0xf]
        %vm389 = vcmp.ge.f32.partialorder %v387, 0.0
        %v390 = vmul.f32 %v387, 0.2
        %v391 = vsel %vm389, %v387, %v390
        %vm392 = vcmp.ge.f32.partialorder %v388, 0.0
        %v393 = vmul.f32 %v388, 0.2
        %v394 = vsel %vm392, %v388, %v393
        %396 = vrot.lane.b32.xlu0 %v391, 2
        %v397 = vpop.permute.xlu0 %396
        %vm399 = vcmask 15360
        %v400 = vsel %vm399, %v394, %v397
        %401 = vrot.lane.b32.xlu0 %v391, 126
        %v402 = vpop.permute.xlu0 %401
        %405 = vrot.lane.b32.xlu0 %v394, 12
        %v406 = vpop.permute.xlu0 %405
        %vm408 = vcmask 113664
        %v409 = vsel %vm408, %v402, %v406
        %v410 = vld [vmem:[#allocation5] sm:$0xf]
        %s411 = scalar_lea.vmem [#allocation5], 4
        %v412 = vld [vmem:[%s411] sm:$0xf]
        %vm413 = vcmask 31744
        %v415 = vsel %vm413, %v412, 0
        %vm417 = vcmask 1043456
        %v418 = vsel %vm417, %v391, 0
        %420 = vmatpush.msra.mxu0 0.0
        %421 = vmatpush.msra.mxu0 0.0
        %422 = vmatpush.msra.mxu0 0.0
        %423 = vmatpush.msra.mxu0 0.0
        %424 = vmatpush.msra.mxu0 0.0
        %425 = vmatpush.msra.mxu0 0.0
        %426 = vmatpush.msra.mxu0 0.0
        %427 = vmatpush.msra.mxu0 0.0
        %428 = vmatpush.msra.mxu0 0.0
        %429 = vmatpush.msra.mxu0 0.0
        %430 = vmatpush.msra.mxu0 0.0
        %431 = vmatpush.msra.mxu0 0.0
        %432 = vmatpush.msra.mxu0 0.0
        %433 = vmatpush.msra.mxu0 0.0
        %434 = vmatpush.msra.mxu0 0.0
        %435 = vmatpush.msra.mxu0 %v418
        %436 = vmatmul.f32.gmra.mxu0 %v415
        %v437 = vpop.f32.mrf.mxu0
        %v438 = vadd.f32 0.0, %v437
        %439 = vdwg.mxu0
        %v441 = vsel %vm413, %v410, 0
        %v444 = vsel %vm417, %v400, 0
        %446 = vmatpush.msra.mxu0 0.0
        %447 = vmatpush.msra.mxu0 0.0
        %448 = vmatpush.msra.mxu0 0.0
        %449 = vmatpush.msra.mxu0 0.0
        %450 = vmatpush.msra.mxu0 0.0
        %451 = vmatpush.msra.mxu0 0.0
        %452 = vmatpush.msra.mxu0 0.0
        %453 = vmatpush.msra.mxu0 0.0
        %454 = vmatpush.msra.mxu0 0.0
        %455 = vmatpush.msra.mxu0 0.0
        %456 = vmatpush.msra.mxu0 0.0
        %457 = vmatpush.msra.mxu0 0.0
        %458 = vmatpush.msra.mxu0 0.0
        %459 = vmatpush.msra.mxu0 0.0
        %460 = vmatpush.msra.mxu0 0.0
        %461 = vmatpush.msra.mxu0 %v444
        %462 = vmatmul.f32.gmra.mxu0 %v441
        %v463 = vpop.f32.mrf.mxu0
        %v464 = vadd.f32 %v438, %v463
        %465 = vdwg.mxu0
        %s466 = scalar_lea.vmem [#allocation5], 8
        %v467 = vld [vmem:[%s466] sm:$0xf]
        %v469 = vsel %vm413, %v467, 0
        %v472 = vsel %vm417, %v409, 0
        %474 = vmatpush.msra.mxu0 0.0
        %475 = vmatpush.msra.mxu0 0.0
        %476 = vmatpush.msra.mxu0 0.0
        %477 = vmatpush.msra.mxu0 0.0
        %478 = vmatpush.msra.mxu0 0.0
        %479 = vmatpush.msra.mxu0 0.0
        %480 = vmatpush.msra.mxu0 0.0
        %481 = vmatpush.msra.mxu0 0.0
        %482 = vmatpush.msra.mxu0 0.0
        %483 = vmatpush.msra.mxu0 0.0
        %484 = vmatpush.msra.mxu0 0.0
        %485 = vmatpush.msra.mxu0 0.0
        %486 = vmatpush.msra.mxu0 0.0
        %487 = vmatpush.msra.mxu0 0.0
        %488 = vmatpush.msra.mxu0 0.0
        %489 = vmatpush.msra.mxu0 %v472
        %490 = vmatmul.f32.gmra.mxu0 %v469
        %v491 = vpop.f32.mrf.mxu0
        %v492 = vadd.f32 0.0, %v491
        %493 = vdwg.mxu0
        %v494 = vadd.f32 %v464, %v492
        %v495 = vld [vmem:[%s3] sm:$0xf]
        %497 = vset.pattern.permute.xlu0 0
        %498 = vperm.xlu0 %497, %v495
        %v499 = vpop.permute.xlu0 %498
        %v501 = vadd.f32 %v494, %v499
        %vm502 = vcmp.ge.f32.partialorder %v501, 0.0
        %v503 = vmul.f32 %v501, 0.2
        %v504 = vsel %vm502, %v501, %v503
        %v505 = vld [vmem:[#allocation7] sm:$0xf]
        %v506 = vld [vmem:[#allocation8] sm:$0xf]
        %v508 = vsel %vm413, %v506, 0
        %v511 = vsel %vm417, %v504, 0
        %513 = vmatpush.msra.mxu0 0.0
        %514 = vmatpush.msra.mxu0 0.0
        %515 = vmatpush.msra.mxu0 0.0
        %516 = vmatpush.msra.mxu0 0.0
        %517 = vmatpush.msra.mxu0 0.0
        %518 = vmatpush.msra.mxu0 0.0
        %519 = vmatpush.msra.mxu0 0.0
        %520 = vmatpush.msra.mxu0 0.0
        %521 = vmatpush.msra.mxu0 0.0
        %522 = vmatpush.msra.mxu0 0.0
        %523 = vmatpush.msra.mxu0 0.0
        %524 = vmatpush.msra.mxu0 0.0
        %525 = vmatpush.msra.mxu0 0.0
        %526 = vmatpush.msra.mxu0 0.0
        %527 = vmatpush.msra.mxu0 0.0
        %528 = vmatpush.msra.mxu0 %v511
        %529 = vmatmul.f32.gmra.mxu0 %v508
        %v530 = vpop.f32.mrf.mxu0
        %v531 = vadd.f32 0.0, %v530
        %532 = vdwg.mxu0
        %v534 = vsel %vm413, %v505, 0
        %v537 = vsel %vm417, %v387, 0
        %539 = vmatpush.msra.mxu0 0.0
        %540 = vmatpush.msra.mxu0 0.0
        %541 = vmatpush.msra.mxu0 0.0
        %542 = vmatpush.msra.mxu0 0.0
        %543 = vmatpush.msra.mxu0 0.0
        %544 = vmatpush.msra.mxu0 0.0
        %545 = vmatpush.msra.mxu0 0.0
        %546 = vmatpush.msra.mxu0 0.0
        %547 = vmatpush.msra.mxu0 0.0
        %548 = vmatpush.msra.mxu0 0.0
        %549 = vmatpush.msra.mxu0 0.0
        %550 = vmatpush.msra.mxu0 0.0
        %551 = vmatpush.msra.mxu0 0.0
        %552 = vmatpush.msra.mxu0 0.0
        %553 = vmatpush.msra.mxu0 0.0
        %554 = vmatpush.msra.mxu0 %v537
        %555 = vmatmul.f32.gmra.mxu0 %v534
        %v556 = vpop.f32.mrf.mxu0
        %v557 = vadd.f32 %v531, %v556
        %558 = vdwg.mxu0
        %v559 = vld [vmem:[%s6] sm:$0xf]
        %561 = vset.pattern.permute.xlu0 0
        %562 = vperm.xlu0 %561, %v559
        %v563 = vpop.permute.xlu0 %562
        %v565 = vadd.f32 %v557, %v563
        %vm566 = vcmask 125952
        %567 = vst.msk [vmem:[%s379] sm:$0xf] %vm566, %v565
        %s568 = sand.u32 %s209, 1
        %s569 = scalar_lea.sflag [#allocation4], %s568
        %s570 = sand.u32 %s209, 1
        %s571 = smul.addr %s570, 4
        %s572 = scalar_lea.vmem [#allocation10], %s571
        // Predicated region
        $region65: #{tpu_custom_call.1} parent=47 // pred_check
          %p573 = pneg %p219
        $region66: #{tpu_custom_call.1} parent=47 // pred_check_branch
          %575 = sbr.rel (%p573) target = $region68
        $region67: #{tpu_custom_call.1} parent=47 // pred_region
          %577 = vsyncadd %s569, 0
          %s578 = sadd.s32 %s31, %s30
          %s579 = smul.addr %s578, 4
          %s580 = scalar_lea.hbm %s7, %s579
          %s582 = sshll.u32 %s572, 4
          %s583 = int_to_ptr.vmem [resolvable:$true] %s582
          %s584 = sshll.u32 %s580, 4
          %s585 = int_to_ptr.hbm [resolvable:$true] %s584
          %587 = dma.vmem_to_hbm [thread:$0]  %s583, 64, %s585, %s569
        $region68: #{tpu_custom_call.1} parent=47 // pred_fallthru
          _
      $region48: #{tpu_custom_call.1} parent=5 // pred_fallthru
        _
      %p588 = scmp.le.s32.totalorder 2, %s21
      // Predicated region
      $region69: #{tpu_custom_call.1} parent=5 // pred_check
        %p589 = pneg %p588
      $region70: #{tpu_custom_call.1} parent=5 // pred_check_branch
        %591 = sbr.rel (%p589) target = $region72
      $region71: #{tpu_custom_call.1} parent=5 // pred_region
        %s592 = ssub.s32 %s21, 2
        // Predicated region
        $region73: #{tpu_custom_call.1} parent=71 // pred_check
          %p593 = pneg %p225
        $region74: #{tpu_custom_call.1} parent=71 // pred_check_branch
          %595 = sbr.rel (%p593) target = $region76
        $region75: #{tpu_custom_call.1} parent=71 // pred_region
          %s596 = sand.u32 %s210, 1
          %s597 = scalar_lea.sflag [#allocation4], %s596
          %s598 = sand.u32 %s210, 1
          %s599 = smul.addr %s598, 4
          %s600 = scalar_lea.vmem [#allocation10], %s599
          %602 = dma.done %s597, 64
        $region76: #{tpu_custom_call.1} parent=71 // pred_fallthru
          _
      $region72: #{tpu_custom_call.1} parent=5 // pred_fallthru
        _
    $region6: #{tpu_custom_call.1} parent=1 // loop_footer
      %s25 = sadd.s32 1, %s21
    $region7: #{tpu_custom_call.1} parent=1 // loop_footer_branch
      %20 = sbr.rel target = $region3
    $region8: #{tpu_custom_call.1} parent=1 // loop_exit
      _
    %603 = vsyncpa [#allocation3], 1
    %s604 = scalar_lea.sflag [#allocation3], 1
    %605 = vsyncpa %s604, 1
    %606 = vsyncpa [#allocation6], 1
    %607 = vsyncpa [#allocation9], 1
    %608 = vsyncpa [#allocation4], 1
    %s609 = scalar_lea.sflag [#allocation4], 1
    %610 = vsyncpa %s609, 1

// kernel: tpu_custom_call.1
$region0: #{tpu_custom_call.1}
  #allocation0 [shape = 'u32[]', space=smem, size = 0x4, offset = 0x4, fixed_abs, tag = 'smem constant byte address 0x4 - core index']
  #allocation1 [shape = 'u32[72,128]{1,0:T(1,128)}', space=vmem, size = 0x9000, scoped, tag = 'internal scratch']
  %s0 = inlined_call_operand.vmem [shape: f32[2,4,16], index: 0, kind: input, shape index: {}]
  %s1 = inlined_call_operand.hbm [shape: f32[2,1,4,128], index: 1, kind: input, shape index: {}]
  %s2 = inlined_call_operand.hbm [shape: f32[3,4,4], index: 2, kind: input, shape index: {}]
  %s3 = inlined_call_operand.vmem [shape: f32[4,1], index: 3, kind: input, shape index: {}]
  %s4 = inlined_call_operand.hbm [shape: f32[4,4], index: 4, kind: input, shape index: {}]
  %s5 = inlined_call_operand.hbm [shape: f32[4,4], index: 5, kind: input, shape index: {}]
  %s6 = inlined_call_operand.vmem [shape: f32[4,1], index: 6, kind: input, shape index: {}]
  %s7 = inlined_call_operand.hbm [shape: f32[2,4,16], index: 7, kind: output, shape index: {}]
  %s8 = sld [smem:[#allocation0]]
  $region77: #{tpu_custom_call.1} parent=0
    _
  %s10 = ssub.s32 1, %s8
  %s11 = scalar_select 0, %s10, %s8
  $region1: #{tpu_custom_call.1} parent=0
    #allocation2 [shape = 'u8[4096]{0}', space=vmem, size = 0x1000, scoped, tag = 'input window, operand 1']
    #allocation3 [shape = 's32[2]{0}', space=sflag, size = 0x8, scoped, tag = 'scoped memory for tpu_custom_call.1']
    #allocation4 [shape = 's32[2]{0}', space=sflag, size = 0x8, scoped, tag = 'scoped memory for tpu_custom_call.1']
    #allocation5 [shape = 'u8[6144]{0}', space=vmem, size = 0x1800, scoped, tag = 'input window, operand 2, single buffered']
    #allocation6 [shape = 's32[1]{0}', space=sflag, size = 0x4, scoped, tag = 'scoped memory for tpu_custom_call.1']
    #allocation7 [shape = 'u8[2048]{0}', space=vmem, size = 0x800, scoped, tag = 'input window, operand 4, single buffered']
    #allocation8 [shape = 'u8[2048]{0}', space=vmem, size = 0x800, scoped, tag = 'input window, operand 5, single buffered']
    #allocation9 [shape = 's32[1]{0}', space=sflag, size = 0x4, scoped, tag = 'scoped memory for tpu_custom_call.1']
    #allocation10 [shape = 'u8[4096]{0}', space=vmem, size = 0x1000, scoped, tag = 'output window, operand 0']
    %12 = vsyncpa [#allocation3], 0
    %s13 = scalar_lea.sflag [#allocation3], 1
    %14 = vsyncpa %s13, 0
    %15 = vsyncpa [#allocation6], 0
    %16 = vsyncpa [#allocation9], 0
    %17 = vsyncpa [#allocation4], 0
    %s18 = scalar_lea.sflag [#allocation4], 1
    %19 = vsyncpa %s18, 0
    loop: start=0, step=1, limit=4
    $region2: #{tpu_custom_call.1} parent=1 // loop_pre_header
      _
    $region3: #{tpu_custom_call.1} parent=1 // loop_header
      %s21 = sphi 0, %s25
      %p22 = scmp.ge.s32.totalorder %s21, 4
      %s28 = sphi 0, %s40
      %s29 = sphi 0, %s36
      %s30 = sphi 0, %s28
      %s31 = sphi 0, %s29
      %s32 = sphi 0, %s30
      %s33 = sphi 0, %s31
      %s45 = sphi 0, %s47
      %s48 = sphi 0, %s45
      %s49 = sphi 0, %s48
      %s65 = sphi 0, %s49
      %s73 = sphi 0, %s75
      %s76 = sphi 0, %s73
      %s77 = sphi 0, %s76
      %s93 = sphi 0, %s77
      %s97 = sphi 0, %s97
      %s99 = sphi 0, %s97
      %s100 = sphi 0, %s99
      %s114 = sphi 0, %s100
      %s118 = sphi 0, %s118
      %s120 = sphi 0, %s118
      %s121 = sphi 0, %s120
      %s135 = sphi 0, %s121
      %s139 = sphi 0, %s139
      %s141 = sphi 0, %s139
      %s142 = sphi 0, %s141
      %s156 = sphi 0, %s142
      %s160 = sphi 0, %s160
      %s162 = sphi 0, %s160
      %s163 = sphi 0, %s162
      %s177 = sphi 0, %s163
      %s181 = sphi 0, %s181
      %s183 = sphi 0, %s181
      %s184 = sphi 0, %s183
      %s198 = sphi 0, %s184
      %s206 = sphi 0, %s208
      %s209 = sphi 0, %s206
      %s210 = sphi 0, %s209
      %s226 = sphi 0, %s210
    $region4: #{tpu_custom_call.1} parent=1 // loop_header_branch
      %24 = sbr.rel (%p22) target = $region8
    $region5: #{tpu_custom_call.1} parent=1 // loop_body
      %s26 = ssub.s32 %s21, 1
      %s27 = ssub.s32 %s21, 2
      %s34 = sadd.s32 1, %s29
      %p35 = scmp.ge.s32.totalorder %s34, 1
      %s36 = scalar_select %p35, 0, %s34
      %s37 = sadd.s32 1, %s28
      %s38 = scalar_select %p35, %s37, %s28
      %p39 = scmp.ge.s32.totalorder %s38, 2
      %s40 = scalar_select %p39, 0, %s38
      %s41 = ssub.s32 %s28, %s40
      %s42 = ssub.s32 %s29, %s36
      %s43 = sor.u32 %s41, %s42
      %p44 = scmp.eq.s32.totalorder %s43, 0
      %s46 = sadd.s32 %s45, 1
      %s47 = scalar_select %p44, %s45, %s46
      %p50 = pneg %p44
      %p51 = scmp.eq.s32.totalorder %s21, 1
      %p52 = por %p50, %p51
      %p53 = scmp.ne.s32.totalorder %s45, %s48
      %p54 = scmp.eq.s32.totalorder %s21, 0
      %p55 = por %p53, %p54
      %p56 = scmp.ne.s32.totalorder %s45, %s48
      %p57 = scmp.eq.s32.totalorder %s26, 1
      %p58 = por %p56, %p57
      %p59 = scmp.ne.s32.totalorder %s48, %s49
      %p60 = scmp.eq.s32.totalorder %s26, 0
      %p61 = por %p59, %p60
      %p62 = scmp.ne.s32.totalorder %s48, %s49
      %p63 = scmp.eq.s32.totalorder %s27, 1
      %p64 = por %p62, %p63
      %p66 = scmp.ne.s32.totalorder %s49, %s65
      %p67 = scmp.eq.s32.totalorder %s27, 0
      %p68 = por %p66, %p67
      %s69 = ssub.s32 %s28, %s40
      %s70 = ssub.s32 %s29, %s36
      %s71 = sor.u32 %s69, %s70
      %p72 = scmp.eq.s32.totalorder %s71, 0
      %s74 = sadd.s32 %s73, 1
      %s75 = scalar_select %p72, %s73, %s74
      %p78 = pneg %p72
      %p79 = scmp.eq.s32.totalorder %s21, 1
      %p80 = por %p78, %p79
      %p81 = scmp.ne.s32.totalorder %s73, %s76
      %p82 = scmp.eq.s32.totalorder %s21, 0
      %p83 = por %p81, %p82
      %p84 = scmp.ne.s32.totalorder %s73, %s76
      %p85 = scmp.eq.s32.totalorder %s26, 1
      %p86 = por %p84, %p85
      %p87 = scmp.ne.s32.totalorder %s76, %s77
      %p88 = scmp.eq.s32.totalorder %s26, 0
      %p89 = por %p87, %p88
      %p90 = scmp.ne.s32.totalorder %s76, %s77
      %p91 = scmp.eq.s32.totalorder %s27, 1
      %p92 = por %p90, %p91
      %p94 = scmp.ne.s32.totalorder %s77, %s93
      %p95 = scmp.eq.s32.totalorder %s27, 0
      %p96 = por %p94, %p95
      %s98 = sadd.s32 %s97, 1
      %p101 = scmp.eq.s32.totalorder %s21, 1
      %p102 = scmp.ne.s32.totalorder %s97, %s99
      %p103 = scmp.eq.s32.totalorder %s21, 0
      %p104 = por %p102, %p103
      %p105 = scmp.ne.s32.totalorder %s97, %s99
      %p106 = scmp.eq.s32.totalorder %s26, 1
      %p107 = por %p105, %p106
      %p108 = scmp.ne.s32.totalorder %s99, %s100
      %p109 = scmp.eq.s32.totalorder %s26, 0
      %p110 = por %p108, %p109
      %p111 = scmp.ne.s32.totalorder %s99, %s100
      %p112 = scmp.eq.s32.totalorder %s27, 1
      %p113 = por %p111, %p112
      %p115 = scmp.ne.s32.totalorder %s100, %s114
      %p116 = scmp.eq.s32.totalorder %s27, 0
      %p117 = por %p115, %p116
      %s119 = sadd.s32 %s118, 1
      %p122 = scmp.eq.s32.totalorder %s21, 1
      %p123 = scmp.ne.s32.totalorder %s118, %s120
      %p124 = scmp.eq.s32.totalorder %s21, 0
      %p125 = por %p123, %p124
      %p126 = scmp.ne.s32.totalorder %s118, %s120
      %p127 = scmp.eq.s32.totalorder %s26, 1
      %p128 = por %p126, %p127
      %p129 = scmp.ne.s32.totalorder %s120, %s121
      %p130 = scmp.eq.s32.totalorder %s26, 0
      %p131 = por %p129, %p130
      %p132 = scmp.ne.s32.totalorder %s120, %s121
      %p133 = scmp.eq.s32.totalorder %s27, 1
      %p134 = por %p132, %p133
      %p136 = scmp.ne.s32.totalorder %s121, %s135
      %p137 = scmp.eq.s32.totalorder %s27, 0
      %p138 = por %p136, %p137
      %s140 = sadd.s32 %s139, 1
      %p143 = scmp.eq.s32.totalorder %s21, 1
      %p144 = scmp.ne.s32.totalorder %s139, %s141
      %p145 = scmp.eq.s32.totalorder %s21, 0
      %p146 = por %p144, %p145
      %p147 = scmp.ne.s32.totalorder %s139, %s141
      %p148 = scmp.eq.s32.totalorder %s26, 1
      %p149 = por %p147, %p148
      %p150 = scmp.ne.s32.totalorder %s141, %s142
      %p151 = scmp.eq.s32.totalorder %s26, 0
      %p152 = por %p150, %p151
      %p153 = scmp.ne.s32.totalorder %s141, %s142
      %p154 = scmp.eq.s32.totalorder %s27, 1
      %p155 = por %p153, %p154
      %p157 = scmp.ne.s32.totalorder %s142, %s156
      %p158 = scmp.eq.s32.totalorder %s27, 0
      %p159 = por %p157, %p158
      %s161 = sadd.s32 %s160, 1
      %p164 = scmp.eq.s32.totalorder %s21, 1
      %p165 = scmp.ne.s32.totalorder %s160, %s162
      %p166 = scmp.eq.s32.totalorder %s21, 0
      %p167 = por %p165, %p166
      %p168 = scmp.ne.s32.totalorder %s160, %s162
      %p169 = scmp.eq.s32.totalorder %s26, 1
      %p170 = por %p168, %p169
      %p171 = scmp.ne.s32.totalorder %s162, %s163
      %p172 = scmp.eq.s32.totalorder %s26, 0
      %p173 = por %p171, %p172
      %p174 = scmp.ne.s32.totalorder %s162, %s163
      %p175 = scmp.eq.s32.totalorder %s27, 1
      %p176 = por %p174, %p175
      %p178 = scmp.ne.s32.totalorder %s163, %s177
      %p179 = scmp.eq.s32.totalorder %s27, 0
      %p180 = por %p178, %p179
      %s182 = sadd.s32 %s181, 1
      %p185 = scmp.eq.s32.totalorder %s21, 1
      %p186 = scmp.ne.s32.totalorder %s181, %s183
      %p187 = scmp.eq.s32.totalorder %s21, 0
      %p188 = por %p186, %p187
      %p189 = scmp.ne.s32.totalorder %s181, %s183
      %p190 = scmp.eq.s32.totalorder %s26, 1
      %p191 = por %p189, %p190
      %p192 = scmp.ne.s32.totalorder %s183, %s184
      %p193 = scmp.eq.s32.totalorder %s26, 0
      %p194 = por %p192, %p193
      %p195 = scmp.ne.s32.totalorder %s183, %s184
      %p196 = scmp.eq.s32.totalorder %s27, 1
      %p197 = por %p195, %p196
      %p199 = scmp.ne.s32.totalorder %s184, %s198
      %p200 = scmp.eq.s32.totalorder %s27, 0
      %p201 = por %p199, %p200
      %s202 = ssub.s32 %s28, %s40
      %s203 = ssub.s32 %s29, %s36
      %s204 = sor.u32 %s202, %s203
      %p205 = scmp.eq.s32.totalorder %s204, 0
      %s207 = sadd.s32 %s206, 1
      %s208 = scalar_select %p205, %s206, %s207
      %p211 = pneg %p205
      %p212 = scmp.eq.s32.totalorder %s21, 1
      %p213 = por %p211, %p212
      %p214 = scmp.ne.s32.totalorder %s206, %s209
      %p215 = scmp.eq.s32.totalorder %s21, 0
      %p216 = por %p214, %p215
      %p217 = scmp.ne.s32.totalorder %s206, %s209
      %p218 = scmp.eq.s32.totalorder %s26, 1
      %p219 = por %p217, %p218
      %p220 = scmp.ne.s32.totalorder %s209, %s210
      %p221 = scmp.eq.s32.totalorder %s26, 0
      %p222 = por %p220, %p221
      %p223 = scmp.ne.s32.totalorder %s209, %s210
      %p224 = scmp.eq.s32.totalorder %s27, 1
      %p225 = por %p223, %p224
      %p227 = scmp.ne.s32.totalorder %s210, %s226
      %p228 = scmp.eq.s32.totalorder %s27, 0
      %p229 = por %p227, %p228
      %p230 = scmp.le.s32.totalorder 1, %s21
      %p231 = scmp.lt.s32.totalorder %s21, 3
      %p232 = pnand %p230, %p231
      %p233 = pneg %p232
      // Predicated region
      $region9: #{tpu_custom_call.1} parent=5 // pred_check
        _
      $region10: #{tpu_custom_call.1} parent=5 // pred_check_branch
        %235 = sbr.rel (%p232) target = $region12
      $region11: #{tpu_custom_call.1} parent=5 // pred_region
        %s236 = ssub.s32 %s21, 1
        // Predicated region
        $region13: #{tpu_custom_call.1} parent=11 // pred_check
          %p237 = pneg %p110
        $region14: #{tpu_custom_call.1} parent=11 // pred_check_branch
          %239 = sbr.rel (%p237) target = $region16
        $region15: #{tpu_custom_call.1} parent=11 // pred_region
          %241 = vsyncadd [#allocation6], 0
          %s242 = sshll.u32 %s2, 4
          %s243 = int_to_ptr.hbm [resolvable:$true] %s242
          %s244 = sshll.u32 [#allocation5], 4
          %s245 = int_to_ptr.vmem [resolvable:$true] %s244
          %250 = dma.hbm_to_vmem [thread:$0]  %s243, 192, %s245, [#allocation6], 64, 64, 4
        $region16: #{tpu_custom_call.1} parent=11 // pred_fallthru
          _
        // Predicated region
        $region17: #{tpu_custom_call.1} parent=11 // pred_check
          %p251 = pneg %p131
        $region18: #{tpu_custom_call.1} parent=11 // pred_check_branch
          %253 = sbr.rel (%p251) target = $region20
        $region19: #{tpu_custom_call.1} parent=11 // pred_region
          _
        $region20: #{tpu_custom_call.1} parent=11 // pred_fallthru
          _
        // Predicated region
        $region21: #{tpu_custom_call.1} parent=11 // pred_check
          %p254 = pneg %p152
        $region22: #{tpu_custom_call.1} parent=11 // pred_check_branch
          %256 = sbr.rel (%p254) target = $region24
        $region23: #{tpu_custom_call.1} parent=11 // pred_region
          %258 = vsyncadd [#allocation6], 0
          %s260 = sshll.u32 %s4, 4
          %s261 = int_to_ptr.hbm [resolvable:$true] %s260
          %s262 = sshll.u32 [#allocation7], 4
          %s263 = int_to_ptr.vmem [resolvable:$true] %s262
          %265 = dma.hbm_to_vmem [thread:$0]  %s261, 64, %s263, [#allocation6]
        $region24: #{tpu_custom_call.1} parent=11 // pred_fallthru
          _
        // Predicated region
        $region25: #{tpu_custom_call.1} parent=11 // pred_check
          %p266 = pneg %p173
        $region26: #{tpu_custom_call.1} parent=11 // pred_check_branch
          %268 = sbr.rel (%p266) target = $region28
        $region27: #{tpu_custom_call.1} parent=11 // pred_region
          %270 = vsyncadd [#allocation9], 0
          %s272 = sshll.u32 %s5, 4
          %s273 = int_to_ptr.hbm [resolvable:$true] %s272
          %s274 = sshll.u32 [#allocation8], 4
          %s275 = int_to_ptr.vmem [resolvable:$true] %s274
          %277 = dma.hbm_to_vmem [thread:$0]  %s273, 64, %s275, [#allocation9]
        $region28: #{tpu_custom_call.1} parent=11 // pred_fallthru
          _
        // Predicated region
        $region29: #{tpu_custom_call.1} parent=11 // pred_check
          %p278 = pneg %p194
        $region30: #{tpu_custom_call.1} parent=11 // pred_check_branch
          %280 = sbr.rel (%p278) target = $region32
        $region31: #{tpu_custom_call.1} parent=11 // pred_region
          _
        $region32: #{tpu_custom_call.1} parent=11 // pred_fallthru
          _
      $region12: #{tpu_custom_call.1} parent=5 // pred_fallthru
        _
      %p281 = scmp.lt.s32.totalorder %s21, 2
      // Predicated region
      $region33: #{tpu_custom_call.1} parent=5 // pred_check
        %p282 = pneg %p281
      $region34: #{tpu_custom_call.1} parent=5 // pred_check_branch
        %284 = sbr.rel (%p282) target = $region36
      $region35: #{tpu_custom_call.1} parent=5 // pred_region
        // Predicated region
        $region37: #{tpu_custom_call.1} parent=35 // pred_check
          %p285 = pneg %p55
        $region38: #{tpu_custom_call.1} parent=35 // pred_check_branch
          %287 = sbr.rel (%p285) target = $region40
        $region39: #{tpu_custom_call.1} parent=35 // pred_region
          %p288 = scmp.lt.s32.totalorder %s28, 1
          %s289 = scalar_select %p288, %s28, 1
          %p290 = scmp.lt.s32.totalorder %s29, 0
          %s291 = scalar_select %p290, %s29, 0
          %s292 = sadd.s32 %s291, %s289
          %s293 = smul.addr %s292, 4
          %s294 = scalar_lea.vmem %s0, %s293
        $region40: #{tpu_custom_call.1} parent=35 // pred_fallthru
          _
        // Predicated region
        $region41: #{tpu_custom_call.1} parent=35 // pred_check
          %p295 = pneg %p83
        $region42: #{tpu_custom_call.1} parent=35 // pred_check_branch
          %297 = sbr.rel (%p295) target = $region44
        $region43: #{tpu_custom_call.1} parent=35 // pred_region
          %s298 = sand.u32 %s73, 1
          %s299 = scalar_lea.sflag [#allocation3], %s298
          %s300 = sand.u32 %s73, 1
          %s301 = smul.addr %s300, 4
          %s302 = scalar_lea.vmem [#allocation2], %s301
          %304 = vsyncadd %s299, 0
          %s305 = sadd.s32 %s29, %s28
          %s306 = smul.addr %s305, 4
          %s307 = scalar_lea.hbm %s1, %s306
          %s309 = sshll.u32 %s307, 4
          %s310 = int_to_ptr.hbm [resolvable:$true] %s309
          %s311 = sshll.u32 %s302, 4
          %s312 = int_to_ptr.vmem [resolvable:$true] %s311
          %314 = dma.hbm_to_vmem [thread:$0]  %s310, 64, %s312, %s299
        $region44: #{tpu_custom_call.1} parent=35 // pred_fallthru
          _
      $region36: #{tpu_custom_call.1} parent=5 // pred_fallthru
        _
      %p315 = scmp.le.s32.totalorder 1, %s21
      %p316 = scmp.lt.s32.totalorder %s21, 3
      %p317 = pnand %p315, %p316
      %p318 = pneg %p317
      // Predicated region
      $region45: #{tpu_custom_call.1} parent=5 // pred_check
        _
      $region46: #{tpu_custom_call.1} parent=5 // pred_check_branch
        %320 = sbr.rel (%p317) target = $region48
      $region47: #{tpu_custom_call.1} parent=5 // pred_region
        %s321 = ssub.s32 %s21, 1
        %s322 = sand.u32 %s76, 1
        %s323 = scalar_lea.sflag [#allocation3], %s322
        %s324 = sand.u32 %s76, 1
        %s325 = smul.addr %s324, 4
        %s326 = scalar_lea.vmem [#allocation2], %s325
        // Predicated region
        $region49: #{tpu_custom_call.1} parent=47 // pred_check
          %p327 = pneg %p89
        $region50: #{tpu_custom_call.1} parent=47 // pred_check_branch
          %329 = sbr.rel (%p327) target = $region52
        $region51: #{tpu_custom_call.1} parent=47 // pred_region
          %331 = dma.done %s323, 64
        $region52: #{tpu_custom_call.1} parent=47 // pred_fallthru
          _
        // Predicated region
        $region53: #{tpu_custom_call.1} parent=47 // pred_check
          %p332 = pneg %p110
        $region54: #{tpu_custom_call.1} parent=47 // pred_check_branch
          %334 = sbr.rel (%p332) target = $region56
        $region55: #{tpu_custom_call.1} parent=47 // pred_region
          %336 = dma.done [#allocation6], 192
        $region56: #{tpu_custom_call.1} parent=47 // pred_fallthru
          _
        // Predicated region
        $region57: #{tpu_custom_call.1} parent=47 // pred_check
          %p337 = pneg %p152
        $region58: #{tpu_custom_call.1} parent=47 // pred_check_branch
          %339 = sbr.rel (%p337) target = $region60
        $region59: #{tpu_custom_call.1} parent=47 // pred_region
          %341 = dma.done [#allocation6], 64
        $region60: #{tpu_custom_call.1} parent=47 // pred_fallthru
          _
        // Predicated region
        $region61: #{tpu_custom_call.1} parent=47 // pred_check
          %p342 = pneg %p173
        $region62: #{tpu_custom_call.1} parent=47 // pred_check_branch
          %344 = sbr.rel (%p342) target = $region64
        $region63: #{tpu_custom_call.1} parent=47 // pred_region
          %346 = dma.done [#allocation9], 64
        $region64: #{tpu_custom_call.1} parent=47 // pred_fallthru
          _
        %p347 = scmp.lt.s32.totalorder %s30, 1
        %s348 = scalar_select %p347, %s30, 1
        %p349 = scmp.lt.s32.totalorder %s31, 0
        %s350 = scalar_select %p349, %s31, 0
        %s351 = sadd.s32 %s350, %s348
        %s352 = smul.addr %s351, 4
        %s353 = scalar_lea.vmem %s0, %s352
        %p354 = pneg %p61
        %p355 = pneg %p58
        %s356 = sand.u32 %s76, 1
        %s357 = scalar_lea.sflag [#allocation3], %s356
        %s358 = sand.u32 %s76, 1
        %s359 = smul.addr %s358, 4
        %s360 = scalar_lea.vmem [#allocation2], %s359
        %p361 = pneg %p89
        %p362 = pneg %p86
        %p363 = pneg %p110
        %p364 = pneg %p107
        %p365 = pneg %p131
        %p366 = pneg %p128
        %p367 = pneg %p152
        %p368 = pneg %p149
        %p369 = pneg %p173
        %p370 = pneg %p170
        %p371 = pneg %p194
        %p372 = pneg %p191
        %p373 = pneg %p222
        %p374 = pneg %p219
        %s375 = sand.u32 %s209, 1
        %s376 = scalar_lea.sflag [#allocation4], %s375
        %s377 = sand.u32 %s209, 1
        %s378 = smul.addr %s377, 4
        %s379 = scalar_lea.vmem [#allocation10], %s378
        %p380 = scmp.lt.s32.totalorder %s30, 1
        %s381 = scalar_select %p380, %s30, 1
        %p382 = scmp.lt.s32.totalorder %s31, 0
        %s383 = scalar_select %p382, %s31, 0
        %s384 = sadd.s32 %s383, %s381
        %s385 = smul.addr %s384, 4
        %s386 = scalar_lea.vmem %s0, %s385
        %v387 = vld [vmem:[%s386] sm:$0xf]
        %v388 = vld [vmem:[%s326] sm:$0xf]
        %vm389 = vcmp.ge.f32.partialorder %v387, 0.0
        %v390 = vmul.f32 %v387, 0.2
        %v391 = vsel %vm389, %v387, %v390
        %vm392 = vcmp.ge.f32.partialorder %v388, 0.0
        %v393 = vmul.f32 %v388, 0.2
        %v394 = vsel %vm392, %v388, %v393
        %396 = vrot.lane.b32.xlu0 %v391, 2
        %v397 = vpop.permute.xlu0 %396
        %vm399 = vcmask 15360
        %v400 = vsel %vm399, %v394, %v397
        %401 = vrot.lane.b32.xlu0 %v391, 126
        %v402 = vpop.permute.xlu0 %401
        %405 = vrot.lane.b32.xlu0 %v394, 12
        %v406 = vpop.permute.xlu0 %405
        %vm408 = vcmask 113664
        %v409 = vsel %vm408, %v402, %v406
        %v410 = vld [vmem:[#allocation5] sm:$0xf]
        %s411 = scalar_lea.vmem [#allocation5], 4
        %v412 = vld [vmem:[%s411] sm:$0xf]
        %vm413 = vcmask 31744
        %v415 = vsel %vm413, %v412, 0
        %vm417 = vcmask 1043456
        %v418 = vsel %vm417, %v391, 0
        %420 = vmatpush.msra.mxu0 0.0
        %421 = vmatpush.msra.mxu0 0.0
        %422 = vmatpush.msra.mxu0 0.0
        %423 = vmatpush.msra.mxu0 0.0
        %424 = vmatpush.msra.mxu0 0.0
        %425 = vmatpush.msra.mxu0 0.0
        %426 = vmatpush.msra.mxu0 0.0
        %427 = vmatpush.msra.mxu0 0.0
        %428 = vmatpush.msra.mxu0 0.0
        %429 = vmatpush.msra.mxu0 0.0
        %430 = vmatpush.msra.mxu0 0.0
        %431 = vmatpush.msra.mxu0 0.0
        %432 = vmatpush.msra.mxu0 0.0
        %433 = vmatpush.msra.mxu0 0.0
        %434 = vmatpush.msra.mxu0 0.0
        %435 = vmatpush.msra.mxu0 %v418
        %436 = vmatmul.f32.gmra.mxu0 %v415
        %v437 = vpop.f32.mrf.mxu0
        %v438 = vadd.f32 0.0, %v437
        %439 = vdwg.mxu0
        %v441 = vsel %vm413, %v410, 0
        %v444 = vsel %vm417, %v400, 0
        %446 = vmatpush.msra.mxu0 0.0
        %447 = vmatpush.msra.mxu0 0.0
        %448 = vmatpush.msra.mxu0 0.0
        %449 = vmatpush.msra.mxu0 0.0
        %450 = vmatpush.msra.mxu0 0.0
        %451 = vmatpush.msra.mxu0 0.0
        %452 = vmatpush.msra.mxu0 0.0
        %453 = vmatpush.msra.mxu0 0.0
        %454 = vmatpush.msra.mxu0 0.0
        %455 = vmatpush.msra.mxu0 0.0
        %456 = vmatpush.msra.mxu0 0.0
        %457 = vmatpush.msra.mxu0 0.0
        %458 = vmatpush.msra.mxu0 0.0
        %459 = vmatpush.msra.mxu0 0.0
        %460 = vmatpush.msra.mxu0 0.0
        %461 = vmatpush.msra.mxu0 %v444
        %462 = vmatmul.f32.gmra.mxu0 %v441
        %v463 = vpop.f32.mrf.mxu0
        %v464 = vadd.f32 %v438, %v463
        %465 = vdwg.mxu0
        %s466 = scalar_lea.vmem [#allocation5], 8
        %v467 = vld [vmem:[%s466] sm:$0xf]
        %v469 = vsel %vm413, %v467, 0
        %v472 = vsel %vm417, %v409, 0
        %474 = vmatpush.msra.mxu0 0.0
        %475 = vmatpush.msra.mxu0 0.0
        %476 = vmatpush.msra.mxu0 0.0
        %477 = vmatpush.msra.mxu0 0.0
        %478 = vmatpush.msra.mxu0 0.0
        %479 = vmatpush.msra.mxu0 0.0
        %480 = vmatpush.msra.mxu0 0.0
        %481 = vmatpush.msra.mxu0 0.0
        %482 = vmatpush.msra.mxu0 0.0
        %483 = vmatpush.msra.mxu0 0.0
        %484 = vmatpush.msra.mxu0 0.0
        %485 = vmatpush.msra.mxu0 0.0
        %486 = vmatpush.msra.mxu0 0.0
        %487 = vmatpush.msra.mxu0 0.0
        %488 = vmatpush.msra.mxu0 0.0
        %489 = vmatpush.msra.mxu0 %v472
        %490 = vmatmul.f32.gmra.mxu0 %v469
        %v491 = vpop.f32.mrf.mxu0
        %v492 = vadd.f32 0.0, %v491
        %493 = vdwg.mxu0
        %v494 = vadd.f32 %v464, %v492
        %v495 = vld [vmem:[%s3] sm:$0xf]
        %497 = vset.pattern.permute.xlu0 0
        %498 = vperm.xlu0 %497, %v495
        %v499 = vpop.permute.xlu0 %498
        %v501 = vadd.f32 %v494, %v499
        %vm502 = vcmp.ge.f32.partialorder %v501, 0.0
        %v503 = vmul.f32 %v501, 0.2
        %v504 = vsel %vm502, %v501, %v503
        %v505 = vld [vmem:[#allocation7] sm:$0xf]
        %v506 = vld [vmem:[#allocation8] sm:$0xf]
        %v508 = vsel %vm413, %v506, 0
        %v511 = vsel %vm417, %v504, 0
        %513 = vmatpush.msra.mxu0 0.0
        %514 = vmatpush.msra.mxu0 0.0
        %515 = vmatpush.msra.mxu0 0.0
        %516 = vmatpush.msra.mxu0 0.0
        %517 = vmatpush.msra.mxu0 0.0
        %518 = vmatpush.msra.mxu0 0.0
        %519 = vmatpush.msra.mxu0 0.0
        %520 = vmatpush.msra.mxu0 0.0
        %521 = vmatpush.msra.mxu0 0.0
        %522 = vmatpush.msra.mxu0 0.0
        %523 = vmatpush.msra.mxu0 0.0
        %524 = vmatpush.msra.mxu0 0.0
        %525 = vmatpush.msra.mxu0 0.0
        %526 = vmatpush.msra.mxu0 0.0
        %527 = vmatpush.msra.mxu0 0.0
        %528 = vmatpush.msra.mxu0 %v511
        %529 = vmatmul.f32.gmra.mxu0 %v508
        %v530 = vpop.f32.mrf.mxu0
        %v531 = vadd.f32 0.0, %v530
        %532 = vdwg.mxu0
        %v534 = vsel %vm413, %v505, 0
        %v537 = vsel %vm417, %v387, 0
        %539 = vmatpush.msra.mxu0 0.0
        %540 = vmatpush.msra.mxu0 0.0
        %541 = vmatpush.msra.mxu0 0.0
        %542 = vmatpush.msra.mxu0 0.0
        %543 = vmatpush.msra.mxu0 0.0
        %544 = vmatpush.msra.mxu0 0.0
        %545 = vmatpush.msra.mxu0 0.0
        %546 = vmatpush.msra.mxu0 0.0
        %547 = vmatpush.msra.mxu0 0.0
        %548 = vmatpush.msra.mxu0 0.0
        %549 = vmatpush.msra.mxu0 0.0
        %550 = vmatpush.msra.mxu0 0.0
        %551 = vmatpush.msra.mxu0 0.0
        %552 = vmatpush.msra.mxu0 0.0
        %553 = vmatpush.msra.mxu0 0.0
        %554 = vmatpush.msra.mxu0 %v537
        %555 = vmatmul.f32.gmra.mxu0 %v534
        %v556 = vpop.f32.mrf.mxu0
        %v557 = vadd.f32 %v531, %v556
        %558 = vdwg.mxu0
        %v559 = vld [vmem:[%s6] sm:$0xf]
        %561 = vset.pattern.permute.xlu0 0
        %562 = vperm.xlu0 %561, %v559
        %v563 = vpop.permute.xlu0 %562
        %v565 = vadd.f32 %v557, %v563
        %vm566 = vcmask 125952
        %567 = vst.msk [vmem:[%s379] sm:$0xf] %vm566, %v565
        %s568 = sand.u32 %s209, 1
        %s569 = scalar_lea.sflag [#allocation4], %s568
        %s570 = sand.u32 %s209, 1
        %s571 = smul.addr %s570, 4
        %s572 = scalar_lea.vmem [#allocation10], %s571
        // Predicated region
        $region65: #{tpu_custom_call.1} parent=47 // pred_check
          %p573 = pneg %p219
        $region66: #{tpu_custom_call.1} parent=47 // pred_check_branch
          %575 = sbr.rel (%p573) target = $region68
        $region67: #{tpu_custom_call.1} parent=47 // pred_region
          %577 = vsyncadd %s569, 0
          %s578 = sadd.s32 %s31, %s30
          %s579 = smul.addr %s578, 4
          %s580 = scalar_lea.hbm %s7, %s579
          %s582 = sshll.u32 %s572, 4
          %s583 = int_to_ptr.vmem [resolvable:$true] %s582
          %s584 = sshll.u32 %s580, 4
          %s585 = int_to_ptr.hbm [resolvable:$true] %s584
          %587 = dma.vmem_to_hbm [thread:$0]  %s583, 64, %s585, %s569
        $region68: #{tpu_custom_call.1} parent=47 // pred_fallthru
          _
      $region48: #{tpu_custom_call.1} parent=5 // pred_fallthru
        _
      %p588 = scmp.le.s32.totalorder 2, %s21
      // Predicated region
      $region69: #{tpu_custom_call.1} parent=5 // pred_check
        %p589 = pneg %p588
      $region70: #{tpu_custom_call.1} parent=5 // pred_check_branch
        %591 = sbr.rel (%p589) target = $region72
      $region71: #{tpu_custom_call.1} parent=5 // pred_region
        %s592 = ssub.s32 %s21, 2
        // Predicated region
        $region73: #{tpu_custom_call.1} parent=71 // pred_check
          %p593 = pneg %p225
        $region74: #{tpu_custom_call.1} parent=71 // pred_check_branch
          %595 = sbr.rel (%p593) target = $region76
        $region75: #{tpu_custom_call.1} parent=71 // pred_region
          %s596 = sand.u32 %s210, 1
          %s597 = scalar_lea.sflag [#allocation4], %s596
          %s598 = sand.u32 %s210, 1
          %s599 = smul.addr %s598, 4
          %s600 = scalar_lea.vmem [#allocation10], %s599
          %602 = dma.done %s597, 64
        $region76: #{tpu_custom_call.1} parent=71 // pred_fallthru
          _
      $region72: #{tpu_custom_call.1} parent=5 // pred_fallthru
        _
    $region6: #{tpu_custom_call.1} parent=1 // loop_footer
      %s25 = sadd.s32 1, %s21
    $region7: #{tpu_custom_call.1} parent=1 // loop_footer_branch
      %20 = sbr.rel target = $region3
    $region8: #{tpu_custom_call.1} parent=1 // loop_exit
      _
    %603 = vsyncpa [#allocation3], 1
    %s604 = scalar_lea.sflag [#allocation3], 1
    %605 = vsyncpa %s604, 1
    %606 = vsyncpa [#allocation6], 1
    %607 = vsyncpa [#allocation9], 1
    %608 = vsyncpa [#allocation4], 1
    %s609 = scalar_lea.sflag [#allocation4], 1
    %610 = vsyncpa %s609, 1

</llo_original>
